<compile_context>
chip_gen: v7x
topology: tpu7x:2x2x1
jax: 0.10.0
libtpu: 0.0.40
codegen_flags: <defaults>
</compile_context>

<pallas_src>
import math
import numpy as np

import jax
import jax.numpy as jnp
from jax.experimental import pallas as pl
from jax.experimental.pallas import tpu as pltpu  # noqa: F401  (TPU backend)

# ----------------------------- configuration --------------------------------
B, S, E, H = 2, 8, 32, 4            # batch, seq, embedding_dim, heads
D_K = E // H                        # 8
NEG = -1000000000.0                 # matches torch masked_fill value


# ------------------------------- kernel -------------------------------------
def mha_kernel(q_ref, k_ref, v_ref, mask_ref,
               wq_ref, bq_ref, wk_ref, bk_ref, wv_ref, bv_ref,
               wo_ref, bo_ref, out_ref, attn_ref):
    scale = 1.0 / math.sqrt(D_K)

    # --- input projections over ALL B*S rows at once (3 MXU matmuls) --------
    # 1/sqrt(d_k) applied in-kernel as a single VPU multiply on projected q.
    q = (jnp.dot(q_ref[...], wq_ref[...], preferred_element_type=jnp.float32)
         + bq_ref[...]) * scale
    k = jnp.dot(k_ref[...], wk_ref[...], preferred_element_type=jnp.float32) + bk_ref[...]
    v = jnp.dot(v_ref[...], wv_ref[...], preferred_element_type=jnp.float32) + bv_ref[...]

    # --- ONE head-major re-layout per tensor: (B*S, E) -> (H, B*S, D_K) ------
    # The H lane slices happen exactly once per tensor; every later per-(b, h)
    # operand is a slab / sublane-aligned view (no per-use lane shuffles).
    def to_heads(x):
        return jnp.stack([x[:, h * D_K:(h + 1) * D_K] for h in range(H)], axis=0)

    qh, kh, vh = to_heads(q), to_heads(k), to_heads(v)

    # masked_fill(mask == 0, -1e9) as an additive key mask, computed in-kernel.
    amask = jnp.where(mask_ref[...] == 0, NEG, 0.0).astype(jnp.float32)   # (B, 1, S)

    attn_blocks = []   # B*H  (S, S) prob blocks, placed along lanes at the end
    head_out = []      # per-batch (S, E) head-concat blocks (registers)

    for b in range(B):                          # static, tiny batch loop
        rows = slice(b * S, (b + 1) * S)        # sublane-aligned (multiple of 8)
        qb = qh[:, rows, :]                     # (H, S, D_K)
        kb = kh[:, rows, :]
        vb = vh[:, rows, :]

        # scores / softmax / probs @ V — head-batched (2 MXU ops per batch).
        s = jnp.einsum('hqd,hkd->hqk', qb, kb,
                       preferred_element_type=jnp.float32)                # (H, S, S)
        s = s + amask[b][None, :, :]                                      # (1, 1, S)
        m = jnp.max(s, axis=-1, keepdims=True)
        e = jnp.exp(s - m)
        p = e * pl.reciprocal(jnp.sum(e, axis=-1, keepdims=True), approx=True)
        o = jnp.einsum('hqk,hkd->hqd', p, vb,
                       preferred_element_type=jnp.float32)                # (H, S, D_K)

        head_out.append(jnp.concatenate([o[h] for h in range(H)], axis=1))   # (S, E)
        attn_blocks.extend([p[h] for h in range(H)])

    # --- ONE output projection for all rows: concat(heads) @ Wo + bo --------
    o_all = jnp.concatenate(head_out, axis=0)                              # (B*S, E)
    out_ref[...] = jnp.dot(o_all, wo_ref[...],
                           preferred_element_type=jnp.float32) + bo_ref[...]

    # --- lane-dense attention store: (S, B*H*S) = (8, 128) == one f32 vreg ---
    # Only ~25 vregs live at this point, so no spill pressure; single unmasked
    # vst + one dense contiguous writeback DMA (vs. 8 masked vst.msk before).
    attn_ref[...] = jnp.concatenate(attn_blocks, axis=1)


# ------------------------------ wrapper --------------------------------------
def multi_head_attention(q, k, v, mask, params):
    """q/k/v: (B,S,E) f32; mask: (B,1,S) int (0 = masked).
    Returns (output (B,S,E), attn (B,H,S,S))."""
    # TODO(synk): only the dec_mask=False path ((B,1,S) key mask) is implemented;
    # a decoder-style (B,S,S) mask would need a per-query-row additive mask.
    q2 = q.reshape(B * S, E).astype(jnp.float32)
    k2 = k.reshape(B * S, E).astype(jnp.float32)
    v2 = v.reshape(B * S, E).astype(jnp.float32)

    out2, attn_slab = pl.pallas_call(
        mha_kernel,
        out_shape=(jax.ShapeDtypeStruct((B * S, E), jnp.float32),
                   jax.ShapeDtypeStruct((S, B * H * S), jnp.float32)),
    )(q2, k2, v2, mask.astype(jnp.int32),
      params["wq"], params["bq"], params["wk"], params["bk"],
      params["wv"], params["bv"], params["wo"], params["bo"])

    # attn_slab[q, (b*H + h)*S + k] == attn[b, h, q, k]
    attn = attn_slab.reshape(S, B, H, S).transpose(1, 2, 0, 3)
    return out2.reshape(B, S, E), attn


mha_jit = jax.jit(multi_head_attention)


# ------------------------ pure-JAX reference (for checking) -------------------
def reference_mha(q, k, v, mask, params):
    hp = jax.lax.Precision.HIGHEST

    def lin(x, w, b):
        return jnp.matmul(x, w, precision=hp) + b

    qh = lin(q, params["wq"], params["bq"]).reshape(B, S, H, D_K).transpose(0, 2, 1, 3)
    kh = lin(k, params["wk"], params["bk"]).reshape(B, S, H, D_K).transpose(0, 2, 1, 3)
    vh = lin(v, params["wv"], params["bv"]).reshape(B, S, H, D_K).transpose(0, 2, 1, 3)
    scores = jnp.einsum("bhqd,bhkd->bhqk", qh, kh, precision=hp) / math.sqrt(D_K)
    mask4 = mask[:, None, :, :]                           # (B,1,1,S) — unsqueeze(1)
    scores = jnp.where(mask4 == 0, NEG, scores)
    attn = jax.nn.softmax(scores, axis=-1)
    o = jnp.einsum("bhqk,bhkd->bhqd", attn, vh, precision=hp)
    o = o.transpose(0, 2, 1, 3).reshape(B, S, E)          # concat heads
    out = lin(o, params["wo"], params["bo"])
    return out, attn


# --------------------------------- main ---------------------------------------
if __name__ == "__main__":
    keys = jax.random.split(jax.random.PRNGKey(0), 16)

    def linear_params(kw, kb, fin, fout):
        # weights stored pre-transposed as (in, out): y = x @ W + b == torch Linear
        w = jax.random.normal(kw, (fin, fout), jnp.float32) / math.sqrt(fin)
        b = jax.random.normal(kb, (1, fout), jnp.float32) * 0.02
        return w, b

    wq, bq = linear_params(keys[0], keys[1], E, E)
    wk, bk = linear_params(keys[2], keys[3], E, E)
    wv, bv = linear_params(keys[4], keys[5], E, E)
    wo, bo = linear_params(keys[6], keys[7], E, E)
    params = dict(wq=wq, bq=bq, wk=wk, bk=bk, wv=wv, bv=bv, wo=wo, bo=bo)

    q = jax.random.normal(keys[8], (B, S, E), jnp.float32)
    k = jax.random.normal(keys[9], (B, S, E), jnp.float32)
    v = jax.random.normal(keys[10], (B, S, E), jnp.float32)
    # integer 0/1 key mask (B, 1, S): mask out the last key position of batch 1
    mask = jnp.ones((B, 1, S), jnp.int32).at[1, 0, S - 1].set(0)

    out, attn = mha_jit(q, k, v, mask, params)
    out = jax.block_until_ready(out)
    attn = jax.block_until_ready(attn)

    ref_out, ref_attn = reference_mha(q, k, v, mask, params)
    np.testing.assert_allclose(np.asarray(out), np.asarray(ref_out), rtol=2e-2, atol=2e-2)
    np.testing.assert_allclose(np.asarray(attn), np.asarray(ref_attn), rtol=2e-2, atol=2e-2)

    print("KERNEL_OK")
</pallas_src>

<mosaic_0001>
module attributes {stable_mosaic.version = 11 : i64} {
  func.func @mha_kernel(%arg0: memref<16x32xf32, #tpu.memory_space<vmem>>, %arg1: memref<16x32xf32, #tpu.memory_space<vmem>>, %arg2: memref<16x32xf32, #tpu.memory_space<vmem>>, %arg3: memref<2x1x8xi32, #tpu.memory_space<vmem>>, %arg4: memref<32x32xf32, #tpu.memory_space<vmem>>, %arg5: memref<1x32xf32, #tpu.memory_space<vmem>>, %arg6: memref<32x32xf32, #tpu.memory_space<vmem>>, %arg7: memref<1x32xf32, #tpu.memory_space<vmem>>, %arg8: memref<32x32xf32, #tpu.memory_space<vmem>>, %arg9: memref<1x32xf32, #tpu.memory_space<vmem>>, %arg10: memref<32x32xf32, #tpu.memory_space<vmem>>, %arg11: memref<1x32xf32, #tpu.memory_space<vmem>>, %arg12: memref<16x32xf32, #tpu.memory_space<vmem>>, %arg13: memref<8x64xf32, #tpu.memory_space<vmem>>) attributes {dimension_semantics = [], scalar_prefetch = 0 : i64, scratch_operands = 0 : i64, tpu.core_type = #tpu.core_type<tc>} {
    %c0 = arith.constant 0 : index
    %c0_0 = arith.constant 0 : index
    %0 = vector.load %arg0[%c0, %c0_0] : memref<16x32xf32, #tpu.memory_space<vmem>>, vector<16x32xf32>
    %c0_1 = arith.constant 0 : index
    %c0_2 = arith.constant 0 : index
    %1 = vector.load %arg4[%c0_1, %c0_2] : memref<32x32xf32, #tpu.memory_space<vmem>>, vector<32x32xf32>
    %cst = arith.constant dense<0.000000e+00> : vector<16x32xf32>
    %2 = tpu.matmul %0, %1, %cst {dimension_numbers = #tpu.dot_dimension_numbers<[1], [0], [0], [1], [0, 0, 1, 1], [], []>} : vector<16x32xf32>, vector<32x32xf32>, vector<16x32xf32> -> vector<16x32xf32>
    %c0_3 = arith.constant 0 : index
    %c0_4 = arith.constant 0 : index
    %3 = vector.load %arg5[%c0_3, %c0_4] : memref<1x32xf32, #tpu.memory_space<vmem>>, vector<1x32xf32>
    %4 = vector.broadcast %3 : vector<1x32xf32> to vector<16x32xf32>
    %5 = arith.addf %2, %4 : vector<16x32xf32>
    %cst_5 = arith.constant 0.353553385 : f32
    %6 = vector.broadcast %cst_5 : f32 to vector<16x32xf32>
    %7 = arith.mulf %5, %6 : vector<16x32xf32>
    %c0_6 = arith.constant 0 : index
    %c0_7 = arith.constant 0 : index
    %8 = vector.load %arg1[%c0_6, %c0_7] : memref<16x32xf32, #tpu.memory_space<vmem>>, vector<16x32xf32>
    %c0_8 = arith.constant 0 : index
    %c0_9 = arith.constant 0 : index
    %9 = vector.load %arg6[%c0_8, %c0_9] : memref<32x32xf32, #tpu.memory_space<vmem>>, vector<32x32xf32>
    %cst_10 = arith.constant dense<0.000000e+00> : vector<16x32xf32>
    %10 = tpu.matmul %8, %9, %cst_10 {dimension_numbers = #tpu.dot_dimension_numbers<[1], [0], [0], [1], [0, 0, 1, 1], [], []>} : vector<16x32xf32>, vector<32x32xf32>, vector<16x32xf32> -> vector<16x32xf32>
    %c0_11 = arith.constant 0 : index
    %c0_12 = arith.constant 0 : index
    %11 = vector.load %arg7[%c0_11, %c0_12] : memref<1x32xf32, #tpu.memory_space<vmem>>, vector<1x32xf32>
    %12 = vector.broadcast %11 : vector<1x32xf32> to vector<16x32xf32>
    %13 = arith.addf %10, %12 : vector<16x32xf32>
    %c0_13 = arith.constant 0 : index
    %c0_14 = arith.constant 0 : index
    %14 = vector.load %arg2[%c0_13, %c0_14] : memref<16x32xf32, #tpu.memory_space<vmem>>, vector<16x32xf32>
    %c0_15 = arith.constant 0 : index
    %c0_16 = arith.constant 0 : index
    %15 = vector.load %arg8[%c0_15, %c0_16] : memref<32x32xf32, #tpu.memory_space<vmem>>, vector<32x32xf32>
    %cst_17 = arith.constant dense<0.000000e+00> : vector<16x32xf32>
    %16 = tpu.matmul %14, %15, %cst_17 {dimension_numbers = #tpu.dot_dimension_numbers<[1], [0], [0], [1], [0, 0, 1, 1], [], []>} : vector<16x32xf32>, vector<32x32xf32>, vector<16x32xf32> -> vector<16x32xf32>
    %c0_18 = arith.constant 0 : index
    %c0_19 = arith.constant 0 : index
    %17 = vector.load %arg9[%c0_18, %c0_19] : memref<1x32xf32, #tpu.memory_space<vmem>>, vector<1x32xf32>
    %18 = vector.broadcast %17 : vector<1x32xf32> to vector<16x32xf32>
    %19 = arith.addf %16, %18 : vector<16x32xf32>
    %20 = vector.extract_strided_slice %7 {offsets = [0, 0], sizes = [16, 8], strides = [1, 1]} : vector<16x32xf32> to vector<16x8xf32>
    %21 = vector.extract_strided_slice %7 {offsets = [0, 8], sizes = [16, 8], strides = [1, 1]} : vector<16x32xf32> to vector<16x8xf32>
    %22 = vector.extract_strided_slice %7 {offsets = [0, 16], sizes = [16, 8], strides = [1, 1]} : vector<16x32xf32> to vector<16x8xf32>
    %23 = vector.extract_strided_slice %7 {offsets = [0, 24], sizes = [16, 8], strides = [1, 1]} : vector<16x32xf32> to vector<16x8xf32>
    %24 = vector.shape_cast %20 : vector<16x8xf32> to vector<1x16x8xf32>
    %25 = vector.shape_cast %21 : vector<16x8xf32> to vector<1x16x8xf32>
    %26 = vector.shape_cast %22 : vector<16x8xf32> to vector<1x16x8xf32>
    %27 = vector.shape_cast %23 : vector<16x8xf32> to vector<1x16x8xf32>
    %28 = tpu.concatenate %24, %25, %26, %27 in 0 : vector<1x16x8xf32>, vector<1x16x8xf32>, vector<1x16x8xf32>, vector<1x16x8xf32> -> vector<4x16x8xf32>
    %29 = vector.extract_strided_slice %13 {offsets = [0, 0], sizes = [16, 8], strides = [1, 1]} : vector<16x32xf32> to vector<16x8xf32>
    %30 = vector.extract_strided_slice %13 {offsets = [0, 8], sizes = [16, 8], strides = [1, 1]} : vector<16x32xf32> to vector<16x8xf32>
    %31 = vector.extract_strided_slice %13 {offsets = [0, 16], sizes = [16, 8], strides = [1, 1]} : vector<16x32xf32> to vector<16x8xf32>
    %32 = vector.extract_strided_slice %13 {offsets = [0, 24], sizes = [16, 8], strides = [1, 1]} : vector<16x32xf32> to vector<16x8xf32>
    %33 = vector.shape_cast %29 : vector<16x8xf32> to vector<1x16x8xf32>
    %34 = vector.shape_cast %30 : vector<16x8xf32> to vector<1x16x8xf32>
    %35 = vector.shape_cast %31 : vector<16x8xf32> to vector<1x16x8xf32>
    %36 = vector.shape_cast %32 : vector<16x8xf32> to vector<1x16x8xf32>
    %37 = tpu.concatenate %33, %34, %35, %36 in 0 : vector<1x16x8xf32>, vector<1x16x8xf32>, vector<1x16x8xf32>, vector<1x16x8xf32> -> vector<4x16x8xf32>
    %38 = vector.extract_strided_slice %19 {offsets = [0, 0], sizes = [16, 8], strides = [1, 1]} : vector<16x32xf32> to vector<16x8xf32>
    %39 = vector.extract_strided_slice %19 {offsets = [0, 8], sizes = [16, 8], strides = [1, 1]} : vector<16x32xf32> to vector<16x8xf32>
    %40 = vector.extract_strided_slice %19 {offsets = [0, 16], sizes = [16, 8], strides = [1, 1]} : vector<16x32xf32> to vector<16x8xf32>
    %41 = vector.extract_strided_slice %19 {offsets = [0, 24], sizes = [16, 8], strides = [1, 1]} : vector<16x32xf32> to vector<16x8xf32>
    %42 = vector.shape_cast %38 : vector<16x8xf32> to vector<1x16x8xf32>
    %43 = vector.shape_cast %39 : vector<16x8xf32> to vector<1x16x8xf32>
    %44 = vector.shape_cast %40 : vector<16x8xf32> to vector<1x16x8xf32>
    %45 = vector.shape_cast %41 : vector<16x8xf32> to vector<1x16x8xf32>
    %46 = tpu.concatenate %42, %43, %44, %45 in 0 : vector<1x16x8xf32>, vector<1x16x8xf32>, vector<1x16x8xf32>, vector<1x16x8xf32> -> vector<4x16x8xf32>
    %c0_20 = arith.constant 0 : index
    %c0_21 = arith.constant 0 : index
    %c0_22 = arith.constant 0 : index
    %47 = vector.load %arg3[%c0_20, %c0_21, %c0_22] : memref<2x1x8xi32, #tpu.memory_space<vmem>>, vector<2x1x8xi32>
    %c0_i32 = arith.constant 0 : i32
    %48 = vector.broadcast %c0_i32 : i32 to vector<2x1x8xi32>
    %49 = arith.cmpi eq, %47, %48 : vector<2x1x8xi32>
    %cst_23 = arith.constant -1.000000e+09 : f32
    %cst_24 = arith.constant 0.000000e+00 : f32
    %50 = vector.broadcast %cst_23 : f32 to vector<2x1x8xf32>
    %51 = vector.broadcast %cst_24 : f32 to vector<2x1x8xf32>
    %52 = arith.select %49, %50, %51 : vector<2x1x8xi1>, vector<2x1x8xf32>
    %53 = vector.extract_strided_slice %28 {offsets = [0, 0, 0], sizes = [4, 8, 8], strides = [1, 1, 1]} : vector<4x16x8xf32> to vector<4x8x8xf32>
    %54 = vector.extract_strided_slice %37 {offsets = [0, 0, 0], sizes = [4, 8, 8], strides = [1, 1, 1]} : vector<4x16x8xf32> to vector<4x8x8xf32>
    %55 = vector.extract_strided_slice %46 {offsets = [0, 0, 0], sizes = [4, 8, 8], strides = [1, 1, 1]} : vector<4x16x8xf32> to vector<4x8x8xf32>
    "tpu.trace_start"() <{level = 10 : i32, message = "hqd,hkd->hqk"}> : () -> ()
    %cst_25 = arith.constant dense<0.000000e+00> : vector<4x8x8xf32>
    %56 = tpu.matmul %53, %54, %cst_25 {dimension_numbers = #tpu.dot_dimension_numbers<[2], [2], [1], [1], [0, 0, 0, 1, 1, 1], [0], [0]>} : vector<4x8x8xf32>, vector<4x8x8xf32>, vector<4x8x8xf32> -> vector<4x8x8xf32>
    "tpu.trace_stop"() : () -> ()
    %57 = vector.extract_strided_slice %52 {offsets = [0, 0, 0], sizes = [1, 1, 8], strides = [1, 1, 1]} : vector<2x1x8xf32> to vector<1x1x8xf32>
    %58 = vector.shape_cast %57 : vector<1x1x8xf32> to vector<1x8xf32>
    %59 = vector.shape_cast %58 : vector<1x8xf32> to vector<1x1x8xf32>
    %60 = vector.broadcast %59 : vector<1x1x8xf32> to vector<4x8x8xf32>
    %61 = arith.addf %56, %60 : vector<4x8x8xf32>
    %cst_26 = arith.constant dense<0xFF800000> : vector<4x8xf32>
    %62 = vector.multi_reduction <maximumf>, %61, %cst_26 [2] : vector<4x8x8xf32> to vector<4x8xf32>
    %63 = vector.shape_cast %62 : vector<4x8xf32> to vector<4x8x1xf32>
    %64 = vector.broadcast %63 : vector<4x8x1xf32> to vector<4x8x8xf32>
    %65 = arith.subf %61, %64 : vector<4x8x8xf32>
    %66 = math.exp %65 : vector<4x8x8xf32>
    %cst_27 = arith.constant dense<0.000000e+00> : vector<4x8xf32>
    %67 = vector.multi_reduction <add>, %66, %cst_27 [2] : vector<4x8x8xf32> to vector<4x8xf32>
    %68 = vector.shape_cast %67 : vector<4x8xf32> to vector<4x8x1xf32>
    %69 = tpu.reciprocal %68 {approx = true} : vector<4x8x1xf32> -> vector<4x8x1xf32>
    %70 = vector.broadcast %69 : vector<4x8x1xf32> to vector<4x8x8xf32>
    %71 = arith.mulf %66, %70 : vector<4x8x8xf32>
    "tpu.trace_start"() <{level = 10 : i32, message = "hqk,hkd->hqd"}> : () -> ()
    %cst_28 = arith.constant dense<0.000000e+00> : vector<4x8x8xf32>
    %72 = tpu.matmul %71, %55, %cst_28 {dimension_numbers = #tpu.dot_dimension_numbers<[2], [1], [1], [2], [0, 0, 0, 1, 1, 2], [0], [0]>} : vector<4x8x8xf32>, vector<4x8x8xf32>, vector<4x8x8xf32> -> vector<4x8x8xf32>
    "tpu.trace_stop"() : () -> ()
    %73 = vector.extract_strided_slice %72 {offsets = [0, 0, 0], sizes = [1, 8, 8], strides = [1, 1, 1]} : vector<4x8x8xf32> to vector<1x8x8xf32>
    %74 = vector.shape_cast %73 : vector<1x8x8xf32> to vector<8x8xf32>
    %75 = vector.extract_strided_slice %72 {offsets = [1, 0, 0], sizes = [1, 8, 8], strides = [1, 1, 1]} : vector<4x8x8xf32> to vector<1x8x8xf32>
    %76 = vector.shape_cast %75 : vector<1x8x8xf32> to vector<8x8xf32>
    %77 = vector.extract_strided_slice %72 {offsets = [2, 0, 0], sizes = [1, 8, 8], strides = [1, 1, 1]} : vector<4x8x8xf32> to vector<1x8x8xf32>
    %78 = vector.shape_cast %77 : vector<1x8x8xf32> to vector<8x8xf32>
    %79 = vector.extract_strided_slice %72 {offsets = [3, 0, 0], sizes = [1, 8, 8], strides = [1, 1, 1]} : vector<4x8x8xf32> to vector<1x8x8xf32>
    %80 = vector.shape_cast %79 : vector<1x8x8xf32> to vector<8x8xf32>
    %81 = tpu.concatenate %74, %76, %78, %80 in 1 : vector<8x8xf32>, vector<8x8xf32>, vector<8x8xf32>, vector<8x8xf32> -> vector<8x32xf32>
    %82 = vector.extract_strided_slice %71 {offsets = [0, 0, 0], sizes = [1, 8, 8], strides = [1, 1, 1]} : vector<4x8x8xf32> to vector<1x8x8xf32>
    %83 = vector.shape_cast %82 : vector<1x8x8xf32> to vector<8x8xf32>
    %84 = vector.extract_strided_slice %71 {offsets = [1, 0, 0], sizes = [1, 8, 8], strides = [1, 1, 1]} : vector<4x8x8xf32> to vector<1x8x8xf32>
    %85 = vector.shape_cast %84 : vector<1x8x8xf32> to vector<8x8xf32>
    %86 = vector.extract_strided_slice %71 {offsets = [2, 0, 0], sizes = [1, 8, 8], strides = [1, 1, 1]} : vector<4x8x8xf32> to vector<1x8x8xf32>
    %87 = vector.shape_cast %86 : vector<1x8x8xf32> to vector<8x8xf32>
    %88 = vector.extract_strided_slice %71 {offsets = [3, 0, 0], sizes = [1, 8, 8], strides = [1, 1, 1]} : vector<4x8x8xf32> to vector<1x8x8xf32>
    %89 = vector.shape_cast %88 : vector<1x8x8xf32> to vector<8x8xf32>
    %90 = vector.extract_strided_slice %28 {offsets = [0, 8, 0], sizes = [4, 8, 8], strides = [1, 1, 1]} : vector<4x16x8xf32> to vector<4x8x8xf32>
    %91 = vector.extract_strided_slice %37 {offsets = [0, 8, 0], sizes = [4, 8, 8], strides = [1, 1, 1]} : vector<4x16x8xf32> to vector<4x8x8xf32>
    %92 = vector.extract_strided_slice %46 {offsets = [0, 8, 0], sizes = [4, 8, 8], strides = [1, 1, 1]} : vector<4x16x8xf32> to vector<4x8x8xf32>
    "tpu.trace_start"() <{level = 10 : i32, message = "hqd,hkd->hqk"}> : () -> ()
    %cst_29 = arith.constant dense<0.000000e+00> : vector<4x8x8xf32>
    %93 = tpu.matmul %90, %91, %cst_29 {dimension_numbers = #tpu.dot_dimension_numbers<[2], [2], [1], [1], [0, 0, 0, 1, 1, 1], [0], [0]>} : vector<4x8x8xf32>, vector<4x8x8xf32>, vector<4x8x8xf32> -> vector<4x8x8xf32>
    "tpu.trace_stop"() : () -> ()
    %94 = vector.extract_strided_slice %52 {offsets = [1, 0, 0], sizes = [1, 1, 8], strides = [1, 1, 1]} : vector<2x1x8xf32> to vector<1x1x8xf32>
    %95 = vector.shape_cast %94 : vector<1x1x8xf32> to vector<1x8xf32>
    %96 = vector.shape_cast %95 : vector<1x8xf32> to vector<1x1x8xf32>
    %97 = vector.broadcast %96 : vector<1x1x8xf32> to vector<4x8x8xf32>
    %98 = arith.addf %93, %97 : vector<4x8x8xf32>
    %cst_30 = arith.constant dense<0xFF800000> : vector<4x8xf32>
    %99 = vector.multi_reduction <maximumf>, %98, %cst_30 [2] : vector<4x8x8xf32> to vector<4x8xf32>
    %100 = vector.shape_cast %99 : vector<4x8xf32> to vector<4x8x1xf32>
    %101 = vector.broadcast %100 : vector<4x8x1xf32> to vector<4x8x8xf32>
    %102 = arith.subf %98, %101 : vector<4x8x8xf32>
    %103 = math.exp %102 : vector<4x8x8xf32>
    %cst_31 = arith.constant dense<0.000000e+00> : vector<4x8xf32>
    %104 = vector.multi_reduction <add>, %103, %cst_31 [2] : vector<4x8x8xf32> to vector<4x8xf32>
    %105 = vector.shape_cast %104 : vector<4x8xf32> to vector<4x8x1xf32>
    %106 = tpu.reciprocal %105 {approx = true} : vector<4x8x1xf32> -> vector<4x8x1xf32>
    %107 = vector.broadcast %106 : vector<4x8x1xf32> to vector<4x8x8xf32>
    %108 = arith.mulf %103, %107 : vector<4x8x8xf32>
    "tpu.trace_start"() <{level = 10 : i32, message = "hqk,hkd->hqd"}> : () -> ()
    %cst_32 = arith.constant dense<0.000000e+00> : vector<4x8x8xf32>
    %109 = tpu.matmul %108, %92, %cst_32 {dimension_numbers = #tpu.dot_dimension_numbers<[2], [1], [1], [2], [0, 0, 0, 1, 1, 2], [0], [0]>} : vector<4x8x8xf32>, vector<4x8x8xf32>, vector<4x8x8xf32> -> vector<4x8x8xf32>
    "tpu.trace_stop"() : () -> ()
    %110 = vector.extract_strided_slice %109 {offsets = [0, 0, 0], sizes = [1, 8, 8], strides = [1, 1, 1]} : vector<4x8x8xf32> to vector<1x8x8xf32>
    %111 = vector.shape_cast %110 : vector<1x8x8xf32> to vector<8x8xf32>
    %112 = vector.extract_strided_slice %109 {offsets = [1, 0, 0], sizes = [1, 8, 8], strides = [1, 1, 1]} : vector<4x8x8xf32> to vector<1x8x8xf32>
    %113 = vector.shape_cast %112 : vector<1x8x8xf32> to vector<8x8xf32>
    %114 = vector.extract_strided_slice %109 {offsets = [2, 0, 0], sizes = [1, 8, 8], strides = [1, 1, 1]} : vector<4x8x8xf32> to vector<1x8x8xf32>
    %115 = vector.shape_cast %114 : vector<1x8x8xf32> to vector<8x8xf32>
    %116 = vector.extract_strided_slice %109 {offsets = [3, 0, 0], sizes = [1, 8, 8], strides = [1, 1, 1]} : vector<4x8x8xf32> to vector<1x8x8xf32>
    %117 = vector.shape_cast %116 : vector<1x8x8xf32> to vector<8x8xf32>
    %118 = tpu.concatenate %111, %113, %115, %117 in 1 : vector<8x8xf32>, vector<8x8xf32>, vector<8x8xf32>, vector<8x8xf32> -> vector<8x32xf32>
    %119 = vector.extract_strided_slice %108 {offsets = [0, 0, 0], sizes = [1, 8, 8], strides = [1, 1, 1]} : vector<4x8x8xf32> to vector<1x8x8xf32>
    %120 = vector.shape_cast %119 : vector<1x8x8xf32> to vector<8x8xf32>
    %121 = vector.extract_strided_slice %108 {offsets = [1, 0, 0], sizes = [1, 8, 8], strides = [1, 1, 1]} : vector<4x8x8xf32> to vector<1x8x8xf32>
    %122 = vector.shape_cast %121 : vector<1x8x8xf32> to vector<8x8xf32>
    %123 = vector.extract_strided_slice %108 {offsets = [2, 0, 0], sizes = [1, 8, 8], strides = [1, 1, 1]} : vector<4x8x8xf32> to vector<1x8x8xf32>
    %124 = vector.shape_cast %123 : vector<1x8x8xf32> to vector<8x8xf32>
    %125 = vector.extract_strided_slice %108 {offsets = [3, 0, 0], sizes = [1, 8, 8], strides = [1, 1, 1]} : vector<4x8x8xf32> to vector<1x8x8xf32>
    %126 = vector.shape_cast %125 : vector<1x8x8xf32> to vector<8x8xf32>
    %127 = tpu.concatenate %81, %118 in 0 : vector<8x32xf32>, vector<8x32xf32> -> vector<16x32xf32>
    %c0_33 = arith.constant 0 : index
    %c0_34 = arith.constant 0 : index
    %128 = vector.load %arg10[%c0_33, %c0_34] : memref<32x32xf32, #tpu.memory_space<vmem>>, vector<32x32xf32>
    %cst_35 = arith.constant dense<0.000000e+00> : vector<16x32xf32>
    %129 = tpu.matmul %127, %128, %cst_35 {dimension_numbers = #tpu.dot_dimension_numbers<[1], [0], [0], [1], [0, 0, 1, 1], [], []>} : vector<16x32xf32>, vector<32x32xf32>, vector<16x32xf32> -> vector<16x32xf32>
    %c0_36 = arith.constant 0 : index
    %c0_37 = arith.constant 0 : index
    %130 = vector.load %arg11[%c0_36, %c0_37] : memref<1x32xf32, #tpu.memory_space<vmem>>, vector<1x32xf32>
    %131 = vector.broadcast %130 : vector<1x32xf32> to vector<16x32xf32>
    %132 = arith.addf %129, %131 : vector<16x32xf32>
    %c0_38 = arith.constant 0 : index
    %c0_39 = arith.constant 0 : index
    %133 = vector.load %arg12[%c0_38, %c0_39] : memref<16x32xf32, #tpu.memory_space<vmem>>, vector<16x32xf32>
    tpu.vector_store %arg12[%c0_38, %c0_39], %132 {strides = array<i32>} : memref<16x32xf32, #tpu.memory_space<vmem>>, vector<16x32xf32>,
    %134 = tpu.concatenate %83, %85, %87, %89, %120, %122, %124, %126 in 1 : vector<8x8xf32>, vector<8x8xf32>, vector<8x8xf32>, vector<8x8xf32>, vector<8x8xf32>, vector<8x8xf32>, vector<8x8xf32>, vector<8x8xf32> -> vector<8x64xf32>
    %c0_40 = arith.constant 0 : index
    %c0_41 = arith.constant 0 : index
    %135 = vector.load %arg13[%c0_40, %c0_41] : memref<8x64xf32, #tpu.memory_space<vmem>>, vector<8x64xf32>
    tpu.vector_store %arg13[%c0_40, %c0_41], %134 {strides = array<i32>} : memref<8x64xf32, #tpu.memory_space<vmem>>, vector<8x64xf32>,
    return
  }
}

</mosaic_0001>

<llo_original>
// kernel: multi_head_attention.1
$region0: #{multi_head_attention.1}
  #allocation0 [shape = 'u32[]', space=smem, size = 0x4, offset = 0x4, fixed_abs, tag = 'smem constant byte address 0x4 - core index']
  #allocation1 [shape = 'u32[144,128]{1,0:T(1,128)}', space=vmem, size = 0x12000, scoped, tag = 'internal scratch']
  %s0 = inlined_call_operand.hbm [shape: f32[16,32], index: 0, kind: input, shape index: {}]
  %s1 = inlined_call_operand.hbm [shape: f32[16,32], index: 1, kind: input, shape index: {}]
  %s2 = inlined_call_operand.vmem [shape: f32[16,32], index: 2, kind: input, shape index: {}]
  %s3 = inlined_call_operand.hbm [shape: s32[2,1,8], index: 3, kind: input, shape index: {}]
  %s4 = inlined_call_operand.vmem [shape: f32[32,32], index: 4, kind: input, shape index: {}]
  %s5 = inlined_call_operand.vmem [shape: f32[1,32], index: 5, kind: input, shape index: {}]
  %s6 = inlined_call_operand.hbm [shape: f32[32,32], index: 6, kind: input, shape index: {}]
  %s7 = inlined_call_operand.hbm [shape: f32[1,32], index: 7, kind: input, shape index: {}]
  %s8 = inlined_call_operand.hbm [shape: f32[32,32], index: 8, kind: input, shape index: {}]
  %s9 = inlined_call_operand.hbm [shape: f32[1,32], index: 9, kind: input, shape index: {}]
  %s10 = inlined_call_operand.hbm [shape: f32[32,32], index: 10, kind: input, shape index: {}]
  %s11 = inlined_call_operand.hbm [shape: f32[1,32], index: 11, kind: input, shape index: {}]
  %s12 = inlined_call_operand.hbm [shape: f32[16,32], index: 12, kind: output, shape index: {0}]
  %s13 = inlined_call_operand.vmem [shape: f32[8,64], index: 13, kind: output, shape index: {1}]
  %14 = xla_tuple %s12, %s13
  %s15 = sld [smem:[#allocation0]]
  $region102: #{multi_head_attention.1} parent=0
    _
  %s17 = ssub.s32 1, %s15
  %s18 = scalar_select 0, %s17, %s15
  $region1: #{multi_head_attention.1} parent=0
    #allocation2 [shape = 'u8[8192]{0}', space=vmem, size = 0x2000, scoped, tag = 'input window, operand 0, single buffered']
    #allocation3 [shape = 's32[1]{0}', space=sflag, size = 0x4, scoped, tag = 'scoped memory for multi_head_attention.1']
    #allocation4 [shape = 's32[1]{0}', space=sflag, size = 0x4, scoped, tag = 'scoped memory for multi_head_attention.1']
    #allocation5 [shape = 'u8[8192]{0}', space=vmem, size = 0x2000, scoped, tag = 'input window, operand 1, single buffered']
    #allocation6 [shape = 's32[1]{0}', space=sflag, size = 0x4, scoped, tag = 'scoped memory for multi_head_attention.1']
    #allocation7 [shape = 'u8[1024]{0}', space=vmem, size = 0x400, scoped, tag = 'input window, operand 3, single buffered']
    #allocation8 [shape = 'u8[16384]{0}', space=vmem, size = 0x4000, scoped, tag = 'input window, operand 6, single buffered']
    #allocation9 [shape = 's32[1]{0}', space=sflag, size = 0x4, scoped, tag = 'scoped memory for multi_head_attention.1']
    #allocation10 [shape = 'u8[512]{0}', space=vmem, size = 0x400, scoped, tag = 'input window, operand 7, single buffered']
    #allocation11 [shape = 'u8[16384]{0}', space=vmem, size = 0x4000, scoped, tag = 'input window, operand 8, single buffered']
    #allocation12 [shape = 's32[1]{0}', space=sflag, size = 0x4, scoped, tag = 'scoped memory for multi_head_attention.1']
    #allocation13 [shape = 'u8[512]{0}', space=vmem, size = 0x400, scoped, tag = 'input window, operand 9, single buffered']
    #allocation14 [shape = 'u8[16384]{0}', space=vmem, size = 0x4000, scoped, tag = 'input window, operand 10, single buffered']
    #allocation15 [shape = 's32[1]{0}', space=sflag, size = 0x4, scoped, tag = 'scoped memory for multi_head_attention.1']
    #allocation16 [shape = 'u8[512]{0}', space=vmem, size = 0x400, scoped, tag = 'input window, operand 11, single buffered']
    #allocation17 [shape = 'u8[8192]{0}', space=vmem, size = 0x2000, scoped, tag = 'output window, operand 0, single buffered']
    %19 = vsyncpa [#allocation3], 0
    %20 = vsyncpa [#allocation6], 0
    %21 = vsyncpa [#allocation9], 0
    %22 = vsyncpa [#allocation12], 0
    %23 = vsyncpa [#allocation15], 0
    %24 = vsyncpa [#allocation4], 0
    // Predicated region
    $region2: #{multi_head_attention.1} parent=1 // pred_check
      _
    $region3: #{multi_head_attention.1} parent=1 // pred_check_branch
      %26 = sbr.rel (0) target = $region5
    $region4: #{multi_head_attention.1} parent=1 // pred_region
      %s28 = ssub.s32 256, 256
      %29 = vsyncadd [#allocation3], %s28
      %s30 = sshll.u32 [#allocation2], 4
      %s31 = int_to_ptr.vmem [resolvable:$true] %s30
      %36 = dma.hbm_to_vmem [thread:$0]  %s0, 256, %s31, [#allocation3], 128, 128, 8
    $region5: #{multi_head_attention.1} parent=1 // pred_fallthru
      _
    // Predicated region
    $region6: #{multi_head_attention.1} parent=1 // pred_check
      _
    $region7: #{multi_head_attention.1} parent=1 // pred_check_branch
      %38 = sbr.rel (0) target = $region9
    $region8: #{multi_head_attention.1} parent=1 // pred_region
      %s40 = ssub.s32 256, 256
      %41 = vsyncadd [#allocation6], %s40
      %s42 = sshll.u32 [#allocation5], 4
      %s43 = int_to_ptr.vmem [resolvable:$true] %s42
      %48 = dma.hbm_to_vmem [thread:$0]  %s1, 256, %s43, [#allocation6], 128, 128, 8
    $region9: #{multi_head_attention.1} parent=1 // pred_fallthru
      _
    // Predicated region
    $region10: #{multi_head_attention.1} parent=1 // pred_check
      _
    $region11: #{multi_head_attention.1} parent=1 // pred_check_branch
      %50 = sbr.rel (0) target = $region13
    $region12: #{multi_head_attention.1} parent=1 // pred_region
      _
    $region13: #{multi_head_attention.1} parent=1 // pred_fallthru
      _
    // Predicated region
    $region14: #{multi_head_attention.1} parent=1 // pred_check
      _
    $region15: #{multi_head_attention.1} parent=1 // pred_check_branch
      %52 = sbr.rel (0) target = $region17
    $region16: #{multi_head_attention.1} parent=1 // pred_region
      %s54 = ssub.s32 32, 32
      %55 = vsyncadd [#allocation6], %s54
      %s56 = sshll.u32 [#allocation7], 4
      %s57 = int_to_ptr.vmem [resolvable:$true] %s56
      %62 = dma.hbm_to_vmem [thread:$0]  %s3, 32, %s57, [#allocation6], 16, 16, 1
    $region17: #{multi_head_attention.1} parent=1 // pred_fallthru
      _
    // Predicated region
    $region18: #{multi_head_attention.1} parent=1 // pred_check
      _
    $region19: #{multi_head_attention.1} parent=1 // pred_check_branch
      %64 = sbr.rel (0) target = $region21
    $region20: #{multi_head_attention.1} parent=1 // pred_region
      _
    $region21: #{multi_head_attention.1} parent=1 // pred_fallthru
      _
    // Predicated region
    $region22: #{multi_head_attention.1} parent=1 // pred_check
      _
    $region23: #{multi_head_attention.1} parent=1 // pred_check_branch
      %66 = sbr.rel (0) target = $region25
    $region24: #{multi_head_attention.1} parent=1 // pred_region
      _
    $region25: #{multi_head_attention.1} parent=1 // pred_fallthru
      _
    // Predicated region
    $region26: #{multi_head_attention.1} parent=1 // pred_check
      _
    $region27: #{multi_head_attention.1} parent=1 // pred_check_branch
      %68 = sbr.rel (0) target = $region29
    $region28: #{multi_head_attention.1} parent=1 // pred_region
      %s70 = ssub.s32 512, 512
      %71 = vsyncadd [#allocation9], %s70
      %s72 = sshll.u32 [#allocation8], 4
      %s73 = int_to_ptr.vmem [resolvable:$true] %s72
      %78 = dma.hbm_to_vmem [thread:$0]  %s6, 512, %s73, [#allocation9], 128, 128, 8
    $region29: #{multi_head_attention.1} parent=1 // pred_fallthru
      _
    // Predicated region
    $region30: #{multi_head_attention.1} parent=1 // pred_check
      _
    $region31: #{multi_head_attention.1} parent=1 // pred_check_branch
      %80 = sbr.rel (0) target = $region33
    $region32: #{multi_head_attention.1} parent=1 // pred_region
      %s82 = ssub.s32 16, 16
      %83 = vsyncadd [#allocation9], %s82
      %s85 = sshll.u32 [#allocation10], 4
      %s86 = int_to_ptr.vmem [resolvable:$true] %s85
      %88 = dma.hbm_to_vmem [thread:$0]  %s7, 16, %s86, [#allocation9]
    $region33: #{multi_head_attention.1} parent=1 // pred_fallthru
      _
    // Predicated region
    $region34: #{multi_head_attention.1} parent=1 // pred_check
      _
    $region35: #{multi_head_attention.1} parent=1 // pred_check_branch
      %90 = sbr.rel (0) target = $region37
    $region36: #{multi_head_attention.1} parent=1 // pred_region
      %s92 = ssub.s32 512, 512
      %93 = vsyncadd [#allocation12], %s92
      %s94 = sshll.u32 [#allocation11], 4
      %s95 = int_to_ptr.vmem [resolvable:$true] %s94
      %100 = dma.hbm_to_vmem [thread:$0]  %s8, 512, %s95, [#allocation12], 128, 128, 8
    $region37: #{multi_head_attention.1} parent=1 // pred_fallthru
      _
    // Predicated region
    $region38: #{multi_head_attention.1} parent=1 // pred_check
      _
    $region39: #{multi_head_attention.1} parent=1 // pred_check_branch
      %102 = sbr.rel (0) target = $region41
    $region40: #{multi_head_attention.1} parent=1 // pred_region
      %s104 = ssub.s32 16, 16
      %105 = vsyncadd [#allocation12], %s104
      %s107 = sshll.u32 [#allocation13], 4
      %s108 = int_to_ptr.vmem [resolvable:$true] %s107
      %110 = dma.hbm_to_vmem [thread:$0]  %s9, 16, %s108, [#allocation12]
    $region41: #{multi_head_attention.1} parent=1 // pred_fallthru
      _
    // Predicated region
    $region42: #{multi_head_attention.1} parent=1 // pred_check
      _
    $region43: #{multi_head_attention.1} parent=1 // pred_check_branch
      %112 = sbr.rel (0) target = $region45
    $region44: #{multi_head_attention.1} parent=1 // pred_region
      %s114 = ssub.s32 512, 512
      %115 = vsyncadd [#allocation15], %s114
      %s116 = sshll.u32 [#allocation14], 4
      %s117 = int_to_ptr.vmem [resolvable:$true] %s116
      %122 = dma.hbm_to_vmem [thread:$0]  %s10, 512, %s117, [#allocation15], 128, 128, 8
    $region45: #{multi_head_attention.1} parent=1 // pred_fallthru
      _
    // Predicated region
    $region46: #{multi_head_attention.1} parent=1 // pred_check
      _
    $region47: #{multi_head_attention.1} parent=1 // pred_check_branch
      %124 = sbr.rel (0) target = $region49
    $region48: #{multi_head_attention.1} parent=1 // pred_region
      %s126 = ssub.s32 16, 16
      %127 = vsyncadd [#allocation15], %s126
      %s129 = sshll.u32 [#allocation16], 4
      %s130 = int_to_ptr.vmem [resolvable:$true] %s129
      %132 = dma.hbm_to_vmem [thread:$0]  %s11, 16, %s130, [#allocation15]
    $region49: #{multi_head_attention.1} parent=1 // pred_fallthru
      _
    // Predicated region
    $region50: #{multi_head_attention.1} parent=1 // pred_check
      _
    $region51: #{multi_head_attention.1} parent=1 // pred_check_branch
      %134 = sbr.rel (0) target = $region53
    $region52: #{multi_head_attention.1} parent=1 // pred_region
      %135 = dma.done [#allocation3], 256
    $region53: #{multi_head_attention.1} parent=1 // pred_fallthru
      _
    // Predicated region
    $region54: #{multi_head_attention.1} parent=1 // pred_check
      _
    $region55: #{multi_head_attention.1} parent=1 // pred_check_branch
      %137 = sbr.rel (0) target = $region57
    $region56: #{multi_head_attention.1} parent=1 // pred_region
      %138 = dma.done [#allocation6], 256
    $region57: #{multi_head_attention.1} parent=1 // pred_fallthru
      _
    // Predicated region
    $region58: #{multi_head_attention.1} parent=1 // pred_check
      _
    $region59: #{multi_head_attention.1} parent=1 // pred_check_branch
      %140 = sbr.rel (0) target = $region61
    $region60: #{multi_head_attention.1} parent=1 // pred_region
      %141 = dma.done [#allocation6], 32
    $region61: #{multi_head_attention.1} parent=1 // pred_fallthru
      _
    // Predicated region
    $region62: #{multi_head_attention.1} parent=1 // pred_check
      _
    $region63: #{multi_head_attention.1} parent=1 // pred_check_branch
      %143 = sbr.rel (0) target = $region65
    $region64: #{multi_head_attention.1} parent=1 // pred_region
      %144 = dma.done [#allocation9], 512
    $region65: #{multi_head_attention.1} parent=1 // pred_fallthru
      _
    // Predicated region
    $region66: #{multi_head_attention.1} parent=1 // pred_check
      _
    $region67: #{multi_head_attention.1} parent=1 // pred_check_branch
      %146 = sbr.rel (0) target = $region69
    $region68: #{multi_head_attention.1} parent=1 // pred_region
      %147 = dma.done [#allocation9], 16
    $region69: #{multi_head_attention.1} parent=1 // pred_fallthru
      _
    // Predicated region
    $region70: #{multi_head_attention.1} parent=1 // pred_check
      _
    $region71: #{multi_head_attention.1} parent=1 // pred_check_branch
      %149 = sbr.rel (0) target = $region73
    $region72: #{multi_head_attention.1} parent=1 // pred_region
      %150 = dma.done [#allocation12], 512
    $region73: #{multi_head_attention.1} parent=1 // pred_fallthru
      _
    // Predicated region
    $region74: #{multi_head_attention.1} parent=1 // pred_check
      _
    $region75: #{multi_head_attention.1} parent=1 // pred_check_branch
      %152 = sbr.rel (0) target = $region77
    $region76: #{multi_head_attention.1} parent=1 // pred_region
      %153 = dma.done [#allocation12], 16
    $region77: #{multi_head_attention.1} parent=1 // pred_fallthru
      _
    // Predicated region
    $region78: #{multi_head_attention.1} parent=1 // pred_check
      _
    $region79: #{multi_head_attention.1} parent=1 // pred_check_branch
      %155 = sbr.rel (0) target = $region81
    $region80: #{multi_head_attention.1} parent=1 // pred_region
      %156 = dma.done [#allocation15], 512
    $region81: #{multi_head_attention.1} parent=1 // pred_fallthru
      _
    // Predicated region
    $region82: #{multi_head_attention.1} parent=1 // pred_check
      _
    $region83: #{multi_head_attention.1} parent=1 // pred_check_branch
      %158 = sbr.rel (0) target = $region85
    $region84: #{multi_head_attention.1} parent=1 // pred_region
      %159 = dma.done [#allocation15], 16
    $region85: #{multi_head_attention.1} parent=1 // pred_fallthru
      _
    %v160 = vld [vmem:[#allocation2] sm:$0xff]
    %v161 = vld [vmem:[#allocation2 + $0x8] sm:$0xff]
    %v162 = vld [vmem:[%s4] sm:$0xff]
    %v163 = vld [vmem:[%s4 + $0x8] sm:$0xff]
    %v164 = vld [vmem:[%s4 + $0x10] sm:$0xff]
    %v165 = vld [vmem:[%s4 + $0x18] sm:$0xff]
    %v166 = vld [vmem:[%s5] sm:$0x1]
    %v168 = vlaneseq
    %v169 = vshrl.u32 %v168, 7
    %v170 = vsub.s32 0, %v169
    %v171 = vrot.slane %v166, %v170
    %vm173 = vcmask 261120
    %v175 = vsel %vm173, %v160, 0
    %v178 = vsel %vm173, %v161, 0
    %180 = vmatprep.subr.mxu0 0.0
    %181 = vmatpush1.msra.mxu0 %v162
    %182 = vmatprep.subr.mxu0 0.0
    %183 = vmatpush1.msra.mxu0 %v163
    %184 = vmatprep.subr.mxu0 0.0
    %185 = vmatpush1.msra.mxu0 %v164
    %186 = vmatprep.subr.mxu0 0.0
    %187 = vmatpush1.msra.mxu0 %v165
    %188 = vmatprep.subr.mxu0 0.0
    %189 = vmatpush1.msra.mxu0 0.0
    %190 = vmatprep.subr.mxu0 0.0
    %191 = vmatpush1.msra.mxu0 0.0
    %192 = vmatprep.subr.mxu0 0.0
    %193 = vmatpush1.msra.mxu0 0.0
    %194 = vmatprep.subr.mxu0 0.0
    %195 = vmatpush1.msra.mxu0 0.0
    %196 = vmatprep.subr.mxu0 0.0
    %197 = vmatpush1.msra.mxu0 0.0
    %198 = vmatprep.subr.mxu0 0.0
    %199 = vmatpush1.msra.mxu0 0.0
    %200 = vmatprep.subr.mxu0 0.0
    %201 = vmatpush1.msra.mxu0 0.0
    %202 = vmatprep.subr.mxu0 0.0
    %203 = vmatpush1.msra.mxu0 0.0
    %204 = vmatprep.subr.mxu0 0.0
    %205 = vmatpush1.msra.mxu0 0.0
    %206 = vmatprep.subr.mxu0 0.0
    %207 = vmatpush1.msra.mxu0 0.0
    %208 = vmatprep.subr.mxu0 0.0
    %209 = vmatpush1.msra.mxu0 0.0
    %210 = vmatprep.subr.mxu0 0.0
    %211 = vmatpush1.msra.mxu0 0.0
    %212 = vmatprep.subr.mxu0 0.0
    %213 = vmatpush1.msra.mxu0 0.0
    %214 = vmatprep.subr.mxu0 0.0
    %215 = vmatpush1.msra.mxu0 0.0
    %216 = vmatprep.subr.mxu0 0.0
    %217 = vmatpush1.msra.mxu0 0.0
    %218 = vmatprep.subr.mxu0 0.0
    %219 = vmatpush1.msra.mxu0 0.0
    %220 = vmatprep.subr.mxu0 0.0
    %221 = vmatpush1.msra.mxu0 0.0
    %222 = vmatprep.subr.mxu0 0.0
    %223 = vmatpush1.msra.mxu0 0.0
    %224 = vmatprep.subr.mxu0 0.0
    %225 = vmatpush1.msra.mxu0 0.0
    %226 = vmatprep.subr.mxu0 0.0
    %227 = vmatpush1.msra.mxu0 0.0
    %228 = vmatprep.subr.mxu0 0.0
    %229 = vmatpush1.msra.mxu0 0.0
    %230 = vmatprep.subr.mxu0 0.0
    %231 = vmatpush1.msra.mxu0 0.0
    %232 = vmatprep.subr.mxu0 0.0
    %233 = vmatpush1.msra.mxu0 0.0
    %234 = vmatprep.subr.mxu0 0.0
    %235 = vmatpush1.msra.mxu0 0.0
    %236 = vmatprep.subr.mxu0 0.0
    %237 = vmatpush1.msra.mxu0 0.0
    %238 = vmatprep.subr.mxu0 0.0
    %239 = vmatpush1.msra.mxu0 0.0
    %240 = vmatprep.subr.mxu0 0.0
    %241 = vmatpush1.msra.mxu0 0.0
    %242 = vmatprep.subr.mxu0 0.0
    %243 = vmatpush1.msra.mxu0 0.0
    %244 = vmatprep.mubr.f32.mxu0 0.0
    %245 = vmatmul.mubr.f32.gmra.mrb[0].mxu0 %v175
    %v246 = vpop.f32.mrb[0].mxu0
    %v247 = vadd.f32 %v171, %v246
    %v248 = vpop.f32.mrb[0].mxu0
    %249 = vmatprep.mubr.f32.mxu0 0.0
    %250 = vmatmul.mubr.f32.gmra.mrb[0].mxu0 %v178
    %v251 = vpop.f32.mrb[0].mxu0
    %v252 = vadd.f32 %v171, %v251
    %v253 = vpop.f32.mrb[0].mxu0
    %254 = vdwg.mxu0
    %v255 = vmul.f32 %v247, 0.35355338
    %v256 = vmul.f32 %v252, 0.35355338
    %v257 = vld [vmem:[#allocation5] sm:$0xff]
    %v258 = vld [vmem:[#allocation5 + $0x8] sm:$0xff]
    %v259 = vld [vmem:[#allocation8] sm:$0xff]
    %v260 = vld [vmem:[#allocation8 + $0x8] sm:$0xff]
    %v261 = vld [vmem:[#allocation8 + $0x10] sm:$0xff]
    %v262 = vld [vmem:[#allocation8 + $0x18] sm:$0xff]
    %v263 = vld [vmem:[#allocation10] sm:$0x1]
    %v265 = vlaneseq
    %v266 = vshrl.u32 %v265, 7
    %v267 = vsub.s32 0, %v266
    %v268 = vrot.slane %v263, %v267
    %v271 = vsel %vm173, %v257, 0
    %v274 = vsel %vm173, %v258, 0
    %276 = vmatprep.subr.mxu0 0.0
    %277 = vmatpush1.msra.mxu0 %v259
    %278 = vmatprep.subr.mxu0 0.0
    %279 = vmatpush1.msra.mxu0 %v260
    %280 = vmatprep.subr.mxu0 0.0
    %281 = vmatpush1.msra.mxu0 %v261
    %282 = vmatprep.subr.mxu0 0.0
    %283 = vmatpush1.msra.mxu0 %v262
    %284 = vmatprep.subr.mxu0 0.0
    %285 = vmatpush1.msra.mxu0 0.0
    %286 = vmatprep.subr.mxu0 0.0
    %287 = vmatpush1.msra.mxu0 0.0
    %288 = vmatprep.subr.mxu0 0.0
    %289 = vmatpush1.msra.mxu0 0.0
    %290 = vmatprep.subr.mxu0 0.0
    %291 = vmatpush1.msra.mxu0 0.0
    %292 = vmatprep.subr.mxu0 0.0
    %293 = vmatpush1.msra.mxu0 0.0
    %294 = vmatprep.subr.mxu0 0.0
    %295 = vmatpush1.msra.mxu0 0.0
    %296 = vmatprep.subr.mxu0 0.0
    %297 = vmatpush1.msra.mxu0 0.0
    %298 = vmatprep.subr.mxu0 0.0
    %299 = vmatpush1.msra.mxu0 0.0
    %300 = vmatprep.subr.mxu0 0.0
    %301 = vmatpush1.msra.mxu0 0.0
    %302 = vmatprep.subr.mxu0 0.0
    %303 = vmatpush1.msra.mxu0 0.0
    %304 = vmatprep.subr.mxu0 0.0
    %305 = vmatpush1.msra.mxu0 0.0
    %306 = vmatprep.subr.mxu0 0.0
    %307 = vmatpush1.msra.mxu0 0.0
    %308 = vmatprep.subr.mxu0 0.0
    %309 = vmatpush1.msra.mxu0 0.0
    %310 = vmatprep.subr.mxu0 0.0
    %311 = vmatpush1.msra.mxu0 0.0
    %312 = vmatprep.subr.mxu0 0.0
    %313 = vmatpush1.msra.mxu0 0.0
    %314 = vmatprep.subr.mxu0 0.0
    %315 = vmatpush1.msra.mxu0 0.0
    %316 = vmatprep.subr.mxu0 0.0
    %317 = vmatpush1.msra.mxu0 0.0
    %318 = vmatprep.subr.mxu0 0.0
    %319 = vmatpush1.msra.mxu0 0.0
    %320 = vmatprep.subr.mxu0 0.0
    %321 = vmatpush1.msra.mxu0 0.0
    %322 = vmatprep.subr.mxu0 0.0
    %323 = vmatpush1.msra.mxu0 0.0
    %324 = vmatprep.subr.mxu0 0.0
    %325 = vmatpush1.msra.mxu0 0.0
    %326 = vmatprep.subr.mxu0 0.0
    %327 = vmatpush1.msra.mxu0 0.0
    %328 = vmatprep.subr.mxu0 0.0
    %329 = vmatpush1.msra.mxu0 0.0
    %330 = vmatprep.subr.mxu0 0.0
    %331 = vmatpush1.msra.mxu0 0.0
    %332 = vmatprep.subr.mxu0 0.0
    %333 = vmatpush1.msra.mxu0 0.0
    %334 = vmatprep.subr.mxu0 0.0
    %335 = vmatpush1.msra.mxu0 0.0
    %336 = vmatprep.subr.mxu0 0.0
    %337 = vmatpush1.msra.mxu0 0.0
    %338 = vmatprep.subr.mxu0 0.0
    %339 = vmatpush1.msra.mxu0 0.0
    %340 = vmatprep.mubr.f32.mxu0 0.0
    %341 = vmatmul.mubr.f32.gmra.mrb[0].mxu0 %v271
    %v342 = vpop.f32.mrb[0].mxu0
    %v343 = vadd.f32 %v268, %v342
    %v344 = vpop.f32.mrb[0].mxu0
    %345 = vmatprep.mubr.f32.mxu0 0.0
    %346 = vmatmul.mubr.f32.gmra.mrb[0].mxu0 %v274
    %v347 = vpop.f32.mrb[0].mxu0
    %v348 = vadd.f32 %v268, %v347
    %v349 = vpop.f32.mrb[0].mxu0
    %350 = vdwg.mxu0
    %v351 = vld [vmem:[%s2] sm:$0xff]
    %v352 = vld [vmem:[%s2 + $0x8] sm:$0xff]
    %v353 = vld [vmem:[#allocation11] sm:$0xff]
    %v354 = vld [vmem:[#allocation11 + $0x8] sm:$0xff]
    %v355 = vld [vmem:[#allocation11 + $0x10] sm:$0xff]
    %v356 = vld [vmem:[#allocation11 + $0x18] sm:$0xff]
    %v357 = vld [vmem:[#allocation13] sm:$0x1]
    %v359 = vlaneseq
    %v360 = vshrl.u32 %v359, 7
    %v361 = vsub.s32 0, %v360
    %v362 = vrot.slane %v357, %v361
    %v365 = vsel %vm173, %v351, 0
    %v368 = vsel %vm173, %v352, 0
    %370 = vmatprep.subr.mxu0 0.0
    %371 = vmatpush1.msra.mxu0 %v353
    %372 = vmatprep.subr.mxu0 0.0
    %373 = vmatpush1.msra.mxu0 %v354
    %374 = vmatprep.subr.mxu0 0.0
    %375 = vmatpush1.msra.mxu0 %v355
    %376 = vmatprep.subr.mxu0 0.0
    %377 = vmatpush1.msra.mxu0 %v356
    %378 = vmatprep.subr.mxu0 0.0
    %379 = vmatpush1.msra.mxu0 0.0
    %380 = vmatprep.subr.mxu0 0.0
    %381 = vmatpush1.msra.mxu0 0.0
    %382 = vmatprep.subr.mxu0 0.0
    %383 = vmatpush1.msra.mxu0 0.0
    %384 = vmatprep.subr.mxu0 0.0
    %385 = vmatpush1.msra.mxu0 0.0
    %386 = vmatprep.subr.mxu0 0.0
    %387 = vmatpush1.msra.mxu0 0.0
    %388 = vmatprep.subr.mxu0 0.0
    %389 = vmatpush1.msra.mxu0 0.0
    %390 = vmatprep.subr.mxu0 0.0
    %391 = vmatpush1.msra.mxu0 0.0
    %392 = vmatprep.subr.mxu0 0.0
    %393 = vmatpush1.msra.mxu0 0.0
    %394 = vmatprep.subr.mxu0 0.0
    %395 = vmatpush1.msra.mxu0 0.0
    %396 = vmatprep.subr.mxu0 0.0
    %397 = vmatpush1.msra.mxu0 0.0
    %398 = vmatprep.subr.mxu0 0.0
    %399 = vmatpush1.msra.mxu0 0.0
    %400 = vmatprep.subr.mxu0 0.0
    %401 = vmatpush1.msra.mxu0 0.0
    %402 = vmatprep.subr.mxu0 0.0
    %403 = vmatpush1.msra.mxu0 0.0
    %404 = vmatprep.subr.mxu0 0.0
    %405 = vmatpush1.msra.mxu0 0.0
    %406 = vmatprep.subr.mxu0 0.0
    %407 = vmatpush1.msra.mxu0 0.0
    %408 = vmatprep.subr.mxu0 0.0
    %409 = vmatpush1.msra.mxu0 0.0
    %410 = vmatprep.subr.mxu0 0.0
    %411 = vmatpush1.msra.mxu0 0.0
    %412 = vmatprep.subr.mxu0 0.0
    %413 = vmatpush1.msra.mxu0 0.0
    %414 = vmatprep.subr.mxu0 0.0
    %415 = vmatpush1.msra.mxu0 0.0
    %416 = vmatprep.subr.mxu0 0.0
    %417 = vmatpush1.msra.mxu0 0.0
    %418 = vmatprep.subr.mxu0 0.0
    %419 = vmatpush1.msra.mxu0 0.0
    %420 = vmatprep.subr.mxu0 0.0
    %421 = vmatpush1.msra.mxu0 0.0
    %422 = vmatprep.subr.mxu0 0.0
    %423 = vmatpush1.msra.mxu0 0.0
    %424 = vmatprep.subr.mxu0 0.0
    %425 = vmatpush1.msra.mxu0 0.0
    %426 = vmatprep.subr.mxu0 0.0
    %427 = vmatpush1.msra.mxu0 0.0
    %428 = vmatprep.subr.mxu0 0.0
    %429 = vmatpush1.msra.mxu0 0.0
    %430 = vmatprep.subr.mxu0 0.0
    %431 = vmatpush1.msra.mxu0 0.0
    %432 = vmatprep.subr.mxu0 0.0
    %433 = vmatpush1.msra.mxu0 0.0
    %434 = vmatprep.mubr.f32.mxu0 0.0
    %435 = vmatmul.mubr.f32.gmra.mrb[0].mxu0 %v365
    %v436 = vpop.f32.mrb[0].mxu0
    %v437 = vadd.f32 %v362, %v436
    %v438 = vpop.f32.mrb[0].mxu0
    %439 = vmatprep.mubr.f32.mxu0 0.0
    %440 = vmatmul.mubr.f32.gmra.mrb[0].mxu0 %v368
    %v441 = vpop.f32.mrb[0].mxu0
    %v442 = vadd.f32 %v362, %v441
    %v443 = vpop.f32.mrb[0].mxu0
    %444 = vdwg.mxu0
    %447 = vrot.lane.b32.xlu0 %v255, 120
    %v448 = vpop.permute.xlu0 %447
    %449 = vrot.lane.b32.xlu0 %v256, 120
    %v450 = vpop.permute.xlu0 %449
    %451 = vrot.lane.b32.xlu0 %v255, 112
    %v452 = vpop.permute.xlu0 %451
    %453 = vrot.lane.b32.xlu0 %v256, 112
    %v454 = vpop.permute.xlu0 %453
    %455 = vrot.lane.b32.xlu0 %v255, 104
    %v456 = vpop.permute.xlu0 %455
    %457 = vrot.lane.b32.xlu0 %v256, 104
    %v458 = vpop.permute.xlu0 %457
    %461 = vrot.lane.b32.xlu0 %v343, 120
    %v462 = vpop.permute.xlu0 %461
    %463 = vrot.lane.b32.xlu0 %v348, 120
    %v464 = vpop.permute.xlu0 %463
    %465 = vrot.lane.b32.xlu0 %v343, 112
    %v466 = vpop.permute.xlu0 %465
    %467 = vrot.lane.b32.xlu0 %v348, 112
    %v468 = vpop.permute.xlu0 %467
    %469 = vrot.lane.b32.xlu0 %v343, 104
    %v470 = vpop.permute.xlu0 %469
    %471 = vrot.lane.b32.xlu0 %v348, 104
    %v472 = vpop.permute.xlu0 %471
    %475 = vrot.lane.b32.xlu0 %v437, 120
    %v476 = vpop.permute.xlu0 %475
    %477 = vrot.lane.b32.xlu0 %v442, 120
    %v478 = vpop.permute.xlu0 %477
    %481 = vrot.lane.b32.xlu0 %v437, 112
    %v482 = vpop.permute.xlu0 %481
    %483 = vrot.lane.b32.xlu0 %v442, 112
    %v484 = vpop.permute.xlu0 %483
    %487 = vrot.lane.b32.xlu0 %v437, 104
    %v488 = vpop.permute.xlu0 %487
    %489 = vrot.lane.b32.xlu0 %v442, 104
    %v490 = vpop.permute.xlu0 %489
    %v493 = vld [vmem:[#allocation7] sm:$0x1]
    %v494 = vld [vmem:[#allocation7 + $0x1] sm:$0x1]
    %vm495 = vcmp.eq.s32.totalorder %v493, 0
    %vm496 = vcmp.eq.s32.totalorder %v494, 0
    %v497 = vsel %vm495, -1e+09, 0.0
    %v498 = vsel %vm496, -1e+09, 0.0
    %v500 = vlaneseq
    %v501 = vshrl.u32 %v500, 7
    %v502 = vsub.s32 0, %v501
    %v503 = vrot.slane %v497, %v502
    %vm505 = vcmask 64512
    %v506 = vsel %vm505, %v255, 0
    %v508 = vsel %vm505, %v343, 0
    %510 = vmatprep.subr.mxu0 0.0
    %511 = vmatpush1.xpose.msra.mxu0 %v508
    %512 = vmatprep.subr.mxu0 0.0
    %513 = vmatpush1.xpose.msra.mxu0 0.0
    %514 = vmatprep.subr.mxu0 0.0
    %515 = vmatpush1.xpose.msra.mxu0 0.0
    %516 = vmatprep.subr.mxu0 0.0
    %517 = vmatpush1.xpose.msra.mxu0 0.0
    %518 = vmatprep.subr.mxu0 0.0
    %519 = vmatpush1.xpose.msra.mxu0 0.0
    %520 = vmatprep.subr.mxu0 0.0
    %521 = vmatpush1.xpose.msra.mxu0 0.0
    %522 = vmatprep.subr.mxu0 0.0
    %523 = vmatpush1.xpose.msra.mxu0 0.0
    %524 = vmatprep.subr.mxu0 0.0
    %525 = vmatpush1.xpose.msra.mxu0 0.0
    %526 = vmatprep.subr.mxu0 0.0
    %527 = vmatpush1.xpose.msra.mxu0 0.0
    %528 = vmatprep.subr.mxu0 0.0
    %529 = vmatpush1.xpose.msra.mxu0 0.0
    %530 = vmatprep.subr.mxu0 0.0
    %531 = vmatpush1.xpose.msra.mxu0 0.0
    %532 = vmatprep.subr.mxu0 0.0
    %533 = vmatpush1.xpose.msra.mxu0 0.0
    %534 = vmatprep.subr.mxu0 0.0
    %535 = vmatpush1.xpose.msra.mxu0 0.0
    %536 = vmatprep.subr.mxu0 0.0
    %537 = vmatpush1.xpose.msra.mxu0 0.0
    %538 = vmatprep.subr.mxu0 0.0
    %539 = vmatpush1.xpose.msra.mxu0 0.0
    %540 = vmatprep.subr.mxu0 0.0
    %541 = vmatpush1.xpose.msra.mxu0 0.0
    %542 = vmatprep.subr.mxu0 0.0
    %543 = vmatpush1.xpose.msra.mxu0 0.0
    %544 = vmatprep.subr.mxu0 0.0
    %545 = vmatpush1.xpose.msra.mxu0 0.0
    %546 = vmatprep.subr.mxu0 0.0
    %547 = vmatpush1.xpose.msra.mxu0 0.0
    %548 = vmatprep.subr.mxu0 0.0
    %549 = vmatpush1.xpose.msra.mxu0 0.0
    %550 = vmatprep.subr.mxu0 0.0
    %551 = vmatpush1.xpose.msra.mxu0 0.0
    %552 = vmatprep.subr.mxu0 0.0
    %553 = vmatpush1.xpose.msra.mxu0 0.0
    %554 = vmatprep.subr.mxu0 0.0
    %555 = vmatpush1.xpose.msra.mxu0 0.0
    %556 = vmatprep.subr.mxu0 0.0
    %557 = vmatpush1.xpose.msra.mxu0 0.0
    %558 = vmatprep.subr.mxu0 0.0
    %559 = vmatpush1.xpose.msra.mxu0 0.0
    %560 = vmatprep.subr.mxu0 0.0
    %561 = vmatpush1.xpose.msra.mxu0 0.0
    %562 = vmatprep.subr.mxu0 0.0
    %563 = vmatpush1.xpose.msra.mxu0 0.0
    %564 = vmatprep.subr.mxu0 0.0
    %565 = vmatpush1.xpose.msra.mxu0 0.0
    %566 = vmatprep.subr.mxu0 0.0
    %567 = vmatpush1.xpose.msra.mxu0 0.0
    %568 = vmatprep.subr.mxu0 0.0
    %569 = vmatpush1.xpose.msra.mxu0 0.0
    %570 = vmatprep.subr.mxu0 0.0
    %571 = vmatpush1.xpose.msra.mxu0 0.0
    %572 = vmatprep.subr.mxu0 0.0
    %573 = vmatpush1.xpose.msra.mxu0 0.0
    %574 = vmatprep.mubr.f32.mxu0 0.0
    %575 = vmatmul.mubr.f32.gmra.mrb[0].mxu0 %v506
    %v576 = vpop.f32.mrb[0].mxu0
    %v577 = vadd.f32 %v503, %v576
    %v578 = vpop.f32.mrb[0].mxu0
    %579 = vdwg.mxu0
    %v580 = vsel %vm505, %v448, 0
    %v582 = vsel %vm505, %v462, 0
    %584 = vmatprep.subr.mxu0 0.0
    %585 = vmatpush1.xpose.msra.mxu0 %v582
    %586 = vmatprep.subr.mxu0 0.0
    %587 = vmatpush1.xpose.msra.mxu0 0.0
    %588 = vmatprep.subr.mxu0 0.0
    %589 = vmatpush1.xpose.msra.mxu0 0.0
    %590 = vmatprep.subr.mxu0 0.0
    %591 = vmatpush1.xpose.msra.mxu0 0.0
    %592 = vmatprep.subr.mxu0 0.0
    %593 = vmatpush1.xpose.msra.mxu0 0.0
    %594 = vmatprep.subr.mxu0 0.0
    %595 = vmatpush1.xpose.msra.mxu0 0.0
    %596 = vmatprep.subr.mxu0 0.0
    %597 = vmatpush1.xpose.msra.mxu0 0.0
    %598 = vmatprep.subr.mxu0 0.0
    %599 = vmatpush1.xpose.msra.mxu0 0.0
    %600 = vmatprep.subr.mxu0 0.0
    %601 = vmatpush1.xpose.msra.mxu0 0.0
    %602 = vmatprep.subr.mxu0 0.0
    %603 = vmatpush1.xpose.msra.mxu0 0.0
    %604 = vmatprep.subr.mxu0 0.0
    %605 = vmatpush1.xpose.msra.mxu0 0.0
    %606 = vmatprep.subr.mxu0 0.0
    %607 = vmatpush1.xpose.msra.mxu0 0.0
    %608 = vmatprep.subr.mxu0 0.0
    %609 = vmatpush1.xpose.msra.mxu0 0.0
    %610 = vmatprep.subr.mxu0 0.0
    %611 = vmatpush1.xpose.msra.mxu0 0.0
    %612 = vmatprep.subr.mxu0 0.0
    %613 = vmatpush1.xpose.msra.mxu0 0.0
    %614 = vmatprep.subr.mxu0 0.0
    %615 = vmatpush1.xpose.msra.mxu0 0.0
    %616 = vmatprep.subr.mxu0 0.0
    %617 = vmatpush1.xpose.msra.mxu0 0.0
    %618 = vmatprep.subr.mxu0 0.0
    %619 = vmatpush1.xpose.msra.mxu0 0.0
    %620 = vmatprep.subr.mxu0 0.0
    %621 = vmatpush1.xpose.msra.mxu0 0.0
    %622 = vmatprep.subr.mxu0 0.0
    %623 = vmatpush1.xpose.msra.mxu0 0.0
    %624 = vmatprep.subr.mxu0 0.0
    %625 = vmatpush1.xpose.msra.mxu0 0.0
    %626 = vmatprep.subr.mxu0 0.0
    %627 = vmatpush1.xpose.msra.mxu0 0.0
    %628 = vmatprep.subr.mxu0 0.0
    %629 = vmatpush1.xpose.msra.mxu0 0.0
    %630 = vmatprep.subr.mxu0 0.0
    %631 = vmatpush1.xpose.msra.mxu0 0.0
    %632 = vmatprep.subr.mxu0 0.0
    %633 = vmatpush1.xpose.msra.mxu0 0.0
    %634 = vmatprep.subr.mxu0 0.0
    %635 = vmatpush1.xpose.msra.mxu0 0.0
    %636 = vmatprep.subr.mxu0 0.0
    %637 = vmatpush1.xpose.msra.mxu0 0.0
    %638 = vmatprep.subr.mxu0 0.0
    %639 = vmatpush1.xpose.msra.mxu0 0.0
    %640 = vmatprep.subr.mxu0 0.0
    %641 = vmatpush1.xpose.msra.mxu0 0.0
    %642 = vmatprep.subr.mxu0 0.0
    %643 = vmatpush1.xpose.msra.mxu0 0.0
    %644 = vmatprep.subr.mxu0 0.0
    %645 = vmatpush1.xpose.msra.mxu0 0.0
    %646 = vmatprep.subr.mxu0 0.0
    %647 = vmatpush1.xpose.msra.mxu0 0.0
    %648 = vmatprep.mubr.f32.mxu0 0.0
    %649 = vmatmul.mubr.f32.gmra.mrb[0].mxu0 %v580
    %v650 = vpop.f32.mrb[0].mxu0
    %v651 = vadd.f32 %v503, %v650
    %v652 = vpop.f32.mrb[0].mxu0
    %653 = vdwg.mxu0
    %v654 = vsel %vm505, %v452, 0
    %v656 = vsel %vm505, %v466, 0
    %658 = vmatprep.subr.mxu0 0.0
    %659 = vmatpush1.xpose.msra.mxu0 %v656
    %660 = vmatprep.subr.mxu0 0.0
    %661 = vmatpush1.xpose.msra.mxu0 0.0
    %662 = vmatprep.subr.mxu0 0.0
    %663 = vmatpush1.xpose.msra.mxu0 0.0
    %664 = vmatprep.subr.mxu0 0.0
    %665 = vmatpush1.xpose.msra.mxu0 0.0
    %666 = vmatprep.subr.mxu0 0.0
    %667 = vmatpush1.xpose.msra.mxu0 0.0
    %668 = vmatprep.subr.mxu0 0.0
    %669 = vmatpush1.xpose.msra.mxu0 0.0
    %670 = vmatprep.subr.mxu0 0.0
    %671 = vmatpush1.xpose.msra.mxu0 0.0
    %672 = vmatprep.subr.mxu0 0.0
    %673 = vmatpush1.xpose.msra.mxu0 0.0
    %674 = vmatprep.subr.mxu0 0.0
    %675 = vmatpush1.xpose.msra.mxu0 0.0
    %676 = vmatprep.subr.mxu0 0.0
    %677 = vmatpush1.xpose.msra.mxu0 0.0
    %678 = vmatprep.subr.mxu0 0.0
    %679 = vmatpush1.xpose.msra.mxu0 0.0
    %680 = vmatprep.subr.mxu0 0.0
    %681 = vmatpush1.xpose.msra.mxu0 0.0
    %682 = vmatprep.subr.mxu0 0.0
    %683 = vmatpush1.xpose.msra.mxu0 0.0
    %684 = vmatprep.subr.mxu0 0.0
    %685 = vmatpush1.xpose.msra.mxu0 0.0
    %686 = vmatprep.subr.mxu0 0.0
    %687 = vmatpush1.xpose.msra.mxu0 0.0
    %688 = vmatprep.subr.mxu0 0.0
    %689 = vmatpush1.xpose.msra.mxu0 0.0
    %690 = vmatprep.subr.mxu0 0.0
    %691 = vmatpush1.xpose.msra.mxu0 0.0
    %692 = vmatprep.subr.mxu0 0.0
    %693 = vmatpush1.xpose.msra.mxu0 0.0
    %694 = vmatprep.subr.mxu0 0.0
    %695 = vmatpush1.xpose.msra.mxu0 0.0
    %696 = vmatprep.subr.mxu0 0.0
    %697 = vmatpush1.xpose.msra.mxu0 0.0
    %698 = vmatprep.subr.mxu0 0.0
    %699 = vmatpush1.xpose.msra.mxu0 0.0
    %700 = vmatprep.subr.mxu0 0.0
    %701 = vmatpush1.xpose.msra.mxu0 0.0
    %702 = vmatprep.subr.mxu0 0.0
    %703 = vmatpush1.xpose.msra.mxu0 0.0
    %704 = vmatprep.subr.mxu0 0.0
    %705 = vmatpush1.xpose.msra.mxu0 0.0
    %706 = vmatprep.subr.mxu0 0.0
    %707 = vmatpush1.xpose.msra.mxu0 0.0
    %708 = vmatprep.subr.mxu0 0.0
    %709 = vmatpush1.xpose.msra.mxu0 0.0
    %710 = vmatprep.subr.mxu0 0.0
    %711 = vmatpush1.xpose.msra.mxu0 0.0
    %712 = vmatprep.subr.mxu0 0.0
    %713 = vmatpush1.xpose.msra.mxu0 0.0
    %714 = vmatprep.subr.mxu0 0.0
    %715 = vmatpush1.xpose.msra.mxu0 0.0
    %716 = vmatprep.subr.mxu0 0.0
    %717 = vmatpush1.xpose.msra.mxu0 0.0
    %718 = vmatprep.subr.mxu0 0.0
    %719 = vmatpush1.xpose.msra.mxu0 0.0
    %720 = vmatprep.subr.mxu0 0.0
    %721 = vmatpush1.xpose.msra.mxu0 0.0
    %722 = vmatprep.mubr.f32.mxu0 0.0
    %723 = vmatmul.mubr.f32.gmra.mrb[0].mxu0 %v654
    %v724 = vpop.f32.mrb[0].mxu0
    %v725 = vadd.f32 %v503, %v724
    %v726 = vpop.f32.mrb[0].mxu0
    %727 = vdwg.mxu0
    %v728 = vsel %vm505, %v456, 0
    %v730 = vsel %vm505, %v470, 0
    %732 = vmatprep.subr.mxu0 0.0
    %733 = vmatpush1.xpose.msra.mxu0 %v730
    %734 = vmatprep.subr.mxu0 0.0
    %735 = vmatpush1.xpose.msra.mxu0 0.0
    %736 = vmatprep.subr.mxu0 0.0
    %737 = vmatpush1.xpose.msra.mxu0 0.0
    %738 = vmatprep.subr.mxu0 0.0
    %739 = vmatpush1.xpose.msra.mxu0 0.0
    %740 = vmatprep.subr.mxu0 0.0
    %741 = vmatpush1.xpose.msra.mxu0 0.0
    %742 = vmatprep.subr.mxu0 0.0
    %743 = vmatpush1.xpose.msra.mxu0 0.0
    %744 = vmatprep.subr.mxu0 0.0
    %745 = vmatpush1.xpose.msra.mxu0 0.0
    %746 = vmatprep.subr.mxu0 0.0
    %747 = vmatpush1.xpose.msra.mxu0 0.0
    %748 = vmatprep.subr.mxu0 0.0
    %749 = vmatpush1.xpose.msra.mxu0 0.0
    %750 = vmatprep.subr.mxu0 0.0
    %751 = vmatpush1.xpose.msra.mxu0 0.0
    %752 = vmatprep.subr.mxu0 0.0
    %753 = vmatpush1.xpose.msra.mxu0 0.0
    %754 = vmatprep.subr.mxu0 0.0
    %755 = vmatpush1.xpose.msra.mxu0 0.0
    %756 = vmatprep.subr.mxu0 0.0
    %757 = vmatpush1.xpose.msra.mxu0 0.0
    %758 = vmatprep.subr.mxu0 0.0
    %759 = vmatpush1.xpose.msra.mxu0 0.0
    %760 = vmatprep.subr.mxu0 0.0
    %761 = vmatpush1.xpose.msra.mxu0 0.0
    %762 = vmatprep.subr.mxu0 0.0
    %763 = vmatpush1.xpose.msra.mxu0 0.0
    %764 = vmatprep.subr.mxu0 0.0
    %765 = vmatpush1.xpose.msra.mxu0 0.0
    %766 = vmatprep.subr.mxu0 0.0
    %767 = vmatpush1.xpose.msra.mxu0 0.0
    %768 = vmatprep.subr.mxu0 0.0
    %769 = vmatpush1.xpose.msra.mxu0 0.0
    %770 = vmatprep.subr.mxu0 0.0
    %771 = vmatpush1.xpose.msra.mxu0 0.0
    %772 = vmatprep.subr.mxu0 0.0
    %773 = vmatpush1.xpose.msra.mxu0 0.0
    %774 = vmatprep.subr.mxu0 0.0
    %775 = vmatpush1.xpose.msra.mxu0 0.0
    %776 = vmatprep.subr.mxu0 0.0
    %777 = vmatpush1.xpose.msra.mxu0 0.0
    %778 = vmatprep.subr.mxu0 0.0
    %779 = vmatpush1.xpose.msra.mxu0 0.0
    %780 = vmatprep.subr.mxu0 0.0
    %781 = vmatpush1.xpose.msra.mxu0 0.0
    %782 = vmatprep.subr.mxu0 0.0
    %783 = vmatpush1.xpose.msra.mxu0 0.0
    %784 = vmatprep.subr.mxu0 0.0
    %785 = vmatpush1.xpose.msra.mxu0 0.0
    %786 = vmatprep.subr.mxu0 0.0
    %787 = vmatpush1.xpose.msra.mxu0 0.0
    %788 = vmatprep.subr.mxu0 0.0
    %789 = vmatpush1.xpose.msra.mxu0 0.0
    %790 = vmatprep.subr.mxu0 0.0
    %791 = vmatpush1.xpose.msra.mxu0 0.0
    %792 = vmatprep.subr.mxu0 0.0
    %793 = vmatpush1.xpose.msra.mxu0 0.0
    %794 = vmatprep.subr.mxu0 0.0
    %795 = vmatpush1.xpose.msra.mxu0 0.0
    %796 = vmatprep.mubr.f32.mxu0 0.0
    %797 = vmatmul.mubr.f32.gmra.mrb[0].mxu0 %v728
    %v798 = vpop.f32.mrb[0].mxu0
    %v799 = vadd.f32 %v503, %v798
    %v800 = vpop.f32.mrb[0].mxu0
    %801 = vdwg.mxu0
    %v802 = vsel %vm505, %v577, -inf
    %803 = vmax.xlane.f32.xlu0 %v802
    %v804 = vpop.xlane.xlu0 %803
    %v805 = vsel %vm505, %v651, -inf
    %806 = vmax.xlane.f32.xlu0 %v805
    %v807 = vpop.xlane.xlu0 %806
    %v808 = vsel %vm505, %v725, -inf
    %809 = vmax.xlane.f32.xlu0 %v808
    %v810 = vpop.xlane.xlu0 %809
    %v811 = vsel %vm505, %v799, -inf
    %812 = vmax.xlane.f32.xlu0 %v811
    %v813 = vpop.xlane.xlu0 %812
    %v814 = vsub.f32 %v577, %v804
    %v815 = vsub.f32 %v651, %v807
    %v816 = vsub.f32 %v725, %v810
    %v817 = vsub.f32 %v799, %v813
    %v818 = vmul.f32 %v814, 1.442695
    %v819 = vpow.pop %v818
    %v820 = vmul.f32 %v815, 1.442695
    %v821 = vpow.pop %v820
    %v822 = vmul.f32 %v816, 1.442695
    %v823 = vpow.pop %v822
    %v824 = vmul.f32 %v817, 1.442695
    %v825 = vpow.pop %v824
    %v826 = vsel %vm505, %v819, 0.0
    %827 = vadd.xlane.f32.xlu0 %v826
    %v828 = vpop.xlane.xlu0 %827
    %v829 = vsel %vm505, %v821, 0.0
    %830 = vadd.xlane.f32.xlu0 %v829
    %v831 = vpop.xlane.xlu0 %830
    %v832 = vsel %vm505, %v823, 0.0
    %833 = vadd.xlane.f32.xlu0 %v832
    %v834 = vpop.xlane.xlu0 %833
    %v835 = vsel %vm505, %v825, 0.0
    %836 = vadd.xlane.f32.xlu0 %v835
    %v837 = vpop.xlane.xlu0 %836
    %v838 = vrcp.pop %v828
    %v839 = vrcp.pop %v831
    %v840 = vrcp.pop %v834
    %v841 = vrcp.pop %v837
    %v842 = vmul.f32 %v819, %v838
    %v843 = vmul.f32 %v821, %v839
    %v844 = vmul.f32 %v823, %v840
    %v845 = vmul.f32 %v825, %v841
    %v847 = vsel %vm505, %v842, 0
    %849 = vmatprep.subr.mxu0 0.0
    %850 = vmatpush1.msra.mxu0 %v437
    %851 = vmatprep.subr.mxu0 0.0
    %852 = vmatpush1.msra.mxu0 0.0
    %853 = vmatprep.subr.mxu0 0.0
    %854 = vmatpush1.msra.mxu0 0.0
    %855 = vmatprep.subr.mxu0 0.0
    %856 = vmatpush1.msra.mxu0 0.0
    %857 = vmatprep.subr.mxu0 0.0
    %858 = vmatpush1.msra.mxu0 0.0
    %859 = vmatprep.subr.mxu0 0.0
    %860 = vmatpush1.msra.mxu0 0.0
    %861 = vmatprep.subr.mxu0 0.0
    %862 = vmatpush1.msra.mxu0 0.0
    %863 = vmatprep.subr.mxu0 0.0
    %864 = vmatpush1.msra.mxu0 0.0
    %865 = vmatprep.subr.mxu0 0.0
    %866 = vmatpush1.msra.mxu0 0.0
    %867 = vmatprep.subr.mxu0 0.0
    %868 = vmatpush1.msra.mxu0 0.0
    %869 = vmatprep.subr.mxu0 0.0
    %870 = vmatpush1.msra.mxu0 0.0
    %871 = vmatprep.subr.mxu0 0.0
    %872 = vmatpush1.msra.mxu0 0.0
    %873 = vmatprep.subr.mxu0 0.0
    %874 = vmatpush1.msra.mxu0 0.0
    %875 = vmatprep.subr.mxu0 0.0
    %876 = vmatpush1.msra.mxu0 0.0
    %877 = vmatprep.subr.mxu0 0.0
    %878 = vmatpush1.msra.mxu0 0.0
    %879 = vmatprep.subr.mxu0 0.0
    %880 = vmatpush1.msra.mxu0 0.0
    %881 = vmatprep.subr.mxu0 0.0
    %882 = vmatpush1.msra.mxu0 0.0
    %883 = vmatprep.subr.mxu0 0.0
    %884 = vmatpush1.msra.mxu0 0.0
    %885 = vmatprep.subr.mxu0 0.0
    %886 = vmatpush1.msra.mxu0 0.0
    %887 = vmatprep.subr.mxu0 0.0
    %888 = vmatpush1.msra.mxu0 0.0
    %889 = vmatprep.subr.mxu0 0.0
    %890 = vmatpush1.msra.mxu0 0.0
    %891 = vmatprep.subr.mxu0 0.0
    %892 = vmatpush1.msra.mxu0 0.0
    %893 = vmatprep.subr.mxu0 0.0
    %894 = vmatpush1.msra.mxu0 0.0
    %895 = vmatprep.subr.mxu0 0.0
    %896 = vmatpush1.msra.mxu0 0.0
    %897 = vmatprep.subr.mxu0 0.0
    %898 = vmatpush1.msra.mxu0 0.0
    %899 = vmatprep.subr.mxu0 0.0
    %900 = vmatpush1.msra.mxu0 0.0
    %901 = vmatprep.subr.mxu0 0.0
    %902 = vmatpush1.msra.mxu0 0.0
    %903 = vmatprep.subr.mxu0 0.0
    %904 = vmatpush1.msra.mxu0 0.0
    %905 = vmatprep.subr.mxu0 0.0
    %906 = vmatpush1.msra.mxu0 0.0
    %907 = vmatprep.subr.mxu0 0.0
    %908 = vmatpush1.msra.mxu0 0.0
    %909 = vmatprep.subr.mxu0 0.0
    %910 = vmatpush1.msra.mxu0 0.0
    %911 = vmatprep.subr.mxu0 0.0
    %912 = vmatpush1.msra.mxu0 0.0
    %913 = vmatprep.mubr.f32.mxu0 0.0
    %914 = vmatmul.mubr.f32.gmra.mrb[0].mxu0 %v847
    %v915 = vpop.f32.mrb[0].mxu0
    %v916 = vadd.f32 0.0, %v915
    %v917 = vpop.f32.mrb[0].mxu0
    %918 = vdwg.mxu0
    %v920 = vsel %vm505, %v843, 0
    %922 = vmatprep.subr.mxu0 0.0
    %923 = vmatpush1.msra.mxu0 %v476
    %924 = vmatprep.subr.mxu0 0.0
    %925 = vmatpush1.msra.mxu0 0.0
    %926 = vmatprep.subr.mxu0 0.0
    %927 = vmatpush1.msra.mxu0 0.0
    %928 = vmatprep.subr.mxu0 0.0
    %929 = vmatpush1.msra.mxu0 0.0
    %930 = vmatprep.subr.mxu0 0.0
    %931 = vmatpush1.msra.mxu0 0.0
    %932 = vmatprep.subr.mxu0 0.0
    %933 = vmatpush1.msra.mxu0 0.0
    %934 = vmatprep.subr.mxu0 0.0
    %935 = vmatpush1.msra.mxu0 0.0
    %936 = vmatprep.subr.mxu0 0.0
    %937 = vmatpush1.msra.mxu0 0.0
    %938 = vmatprep.subr.mxu0 0.0
    %939 = vmatpush1.msra.mxu0 0.0
    %940 = vmatprep.subr.mxu0 0.0
    %941 = vmatpush1.msra.mxu0 0.0
    %942 = vmatprep.subr.mxu0 0.0
    %943 = vmatpush1.msra.mxu0 0.0
    %944 = vmatprep.subr.mxu0 0.0
    %945 = vmatpush1.msra.mxu0 0.0
    %946 = vmatprep.subr.mxu0 0.0
    %947 = vmatpush1.msra.mxu0 0.0
    %948 = vmatprep.subr.mxu0 0.0
    %949 = vmatpush1.msra.mxu0 0.0
    %950 = vmatprep.subr.mxu0 0.0
    %951 = vmatpush1.msra.mxu0 0.0
    %952 = vmatprep.subr.mxu0 0.0
    %953 = vmatpush1.msra.mxu0 0.0
    %954 = vmatprep.subr.mxu0 0.0
    %955 = vmatpush1.msra.mxu0 0.0
    %956 = vmatprep.subr.mxu0 0.0
    %957 = vmatpush1.msra.mxu0 0.0
    %958 = vmatprep.subr.mxu0 0.0
    %959 = vmatpush1.msra.mxu0 0.0
    %960 = vmatprep.subr.mxu0 0.0
    %961 = vmatpush1.msra.mxu0 0.0
    %962 = vmatprep.subr.mxu0 0.0
    %963 = vmatpush1.msra.mxu0 0.0
    %964 = vmatprep.subr.mxu0 0.0
    %965 = vmatpush1.msra.mxu0 0.0
    %966 = vmatprep.subr.mxu0 0.0
    %967 = vmatpush1.msra.mxu0 0.0
    %968 = vmatprep.subr.mxu0 0.0
    %969 = vmatpush1.msra.mxu0 0.0
    %970 = vmatprep.subr.mxu0 0.0
    %971 = vmatpush1.msra.mxu0 0.0
    %972 = vmatprep.subr.mxu0 0.0
    %973 = vmatpush1.msra.mxu0 0.0
    %974 = vmatprep.subr.mxu0 0.0
    %975 = vmatpush1.msra.mxu0 0.0
    %976 = vmatprep.subr.mxu0 0.0
    %977 = vmatpush1.msra.mxu0 0.0
    %978 = vmatprep.subr.mxu0 0.0
    %979 = vmatpush1.msra.mxu0 0.0
    %980 = vmatprep.subr.mxu0 0.0
    %981 = vmatpush1.msra.mxu0 0.0
    %982 = vmatprep.subr.mxu0 0.0
    %983 = vmatpush1.msra.mxu0 0.0
    %984 = vmatprep.subr.mxu0 0.0
    %985 = vmatpush1.msra.mxu0 0.0
    %986 = vmatprep.mubr.f32.mxu0 0.0
    %987 = vmatmul.mubr.f32.gmra.mrb[0].mxu0 %v920
    %v988 = vpop.f32.mrb[0].mxu0
    %v989 = vadd.f32 0.0, %v988
    %v990 = vpop.f32.mrb[0].mxu0
    %991 = vdwg.mxu0
    %v993 = vsel %vm505, %v844, 0
    %995 = vmatprep.subr.mxu0 0.0
    %996 = vmatpush1.msra.mxu0 %v482
    %997 = vmatprep.subr.mxu0 0.0
    %998 = vmatpush1.msra.mxu0 0.0
    %999 = vmatprep.subr.mxu0 0.0
    %1000 = vmatpush1.msra.mxu0 0.0
    %1001 = vmatprep.subr.mxu0 0.0
    %1002 = vmatpush1.msra.mxu0 0.0
    %1003 = vmatprep.subr.mxu0 0.0
    %1004 = vmatpush1.msra.mxu0 0.0
    %1005 = vmatprep.subr.mxu0 0.0
    %1006 = vmatpush1.msra.mxu0 0.0
    %1007 = vmatprep.subr.mxu0 0.0
    %1008 = vmatpush1.msra.mxu0 0.0
    %1009 = vmatprep.subr.mxu0 0.0
    %1010 = vmatpush1.msra.mxu0 0.0
    %1011 = vmatprep.subr.mxu0 0.0
    %1012 = vmatpush1.msra.mxu0 0.0
    %1013 = vmatprep.subr.mxu0 0.0
    %1014 = vmatpush1.msra.mxu0 0.0
    %1015 = vmatprep.subr.mxu0 0.0
    %1016 = vmatpush1.msra.mxu0 0.0
    %1017 = vmatprep.subr.mxu0 0.0
    %1018 = vmatpush1.msra.mxu0 0.0
    %1019 = vmatprep.subr.mxu0 0.0
    %1020 = vmatpush1.msra.mxu0 0.0
    %1021 = vmatprep.subr.mxu0 0.0
    %1022 = vmatpush1.msra.mxu0 0.0
    %1023 = vmatprep.subr.mxu0 0.0
    %1024 = vmatpush1.msra.mxu0 0.0
    %1025 = vmatprep.subr.mxu0 0.0
    %1026 = vmatpush1.msra.mxu0 0.0
    %1027 = vmatprep.subr.mxu0 0.0
    %1028 = vmatpush1.msra.mxu0 0.0
    %1029 = vmatprep.subr.mxu0 0.0
    %1030 = vmatpush1.msra.mxu0 0.0
    %1031 = vmatprep.subr.mxu0 0.0
    %1032 = vmatpush1.msra.mxu0 0.0
    %1033 = vmatprep.subr.mxu0 0.0
    %1034 = vmatpush1.msra.mxu0 0.0
    %1035 = vmatprep.subr.mxu0 0.0
    %1036 = vmatpush1.msra.mxu0 0.0
    %1037 = vmatprep.subr.mxu0 0.0
    %1038 = vmatpush1.msra.mxu0 0.0
    %1039 = vmatprep.subr.mxu0 0.0
    %1040 = vmatpush1.msra.mxu0 0.0
    %1041 = vmatprep.subr.mxu0 0.0
    %1042 = vmatpush1.msra.mxu0 0.0
    %1043 = vmatprep.subr.mxu0 0.0
    %1044 = vmatpush1.msra.mxu0 0.0
    %1045 = vmatprep.subr.mxu0 0.0
    %1046 = vmatpush1.msra.mxu0 0.0
    %1047 = vmatprep.subr.mxu0 0.0
    %1048 = vmatpush1.msra.mxu0 0.0
    %1049 = vmatprep.subr.mxu0 0.0
    %1050 = vmatpush1.msra.mxu0 0.0
    %1051 = vmatprep.subr.mxu0 0.0
    %1052 = vmatpush1.msra.mxu0 0.0
    %1053 = vmatprep.subr.mxu0 0.0
    %1054 = vmatpush1.msra.mxu0 0.0
    %1055 = vmatprep.subr.mxu0 0.0
    %1056 = vmatpush1.msra.mxu0 0.0
    %1057 = vmatprep.subr.mxu0 0.0
    %1058 = vmatpush1.msra.mxu0 0.0
    %1059 = vmatprep.mubr.f32.mxu0 0.0
    %1060 = vmatmul.mubr.f32.gmra.mrb[0].mxu0 %v993
    %v1061 = vpop.f32.mrb[0].mxu0
    %v1062 = vadd.f32 0.0, %v1061
    %v1063 = vpop.f32.mrb[0].mxu0
    %1064 = vdwg.mxu0
    %v1066 = vsel %vm505, %v845, 0
    %1068 = vmatprep.subr.mxu0 0.0
    %1069 = vmatpush1.msra.mxu0 %v488
    %1070 = vmatprep.subr.mxu0 0.0
    %1071 = vmatpush1.msra.mxu0 0.0
    %1072 = vmatprep.subr.mxu0 0.0
    %1073 = vmatpush1.msra.mxu0 0.0
    %1074 = vmatprep.subr.mxu0 0.0
    %1075 = vmatpush1.msra.mxu0 0.0
    %1076 = vmatprep.subr.mxu0 0.0
    %1077 = vmatpush1.msra.mxu0 0.0
    %1078 = vmatprep.subr.mxu0 0.0
    %1079 = vmatpush1.msra.mxu0 0.0
    %1080 = vmatprep.subr.mxu0 0.0
    %1081 = vmatpush1.msra.mxu0 0.0
    %1082 = vmatprep.subr.mxu0 0.0
    %1083 = vmatpush1.msra.mxu0 0.0
    %1084 = vmatprep.subr.mxu0 0.0
    %1085 = vmatpush1.msra.mxu0 0.0
    %1086 = vmatprep.subr.mxu0 0.0
    %1087 = vmatpush1.msra.mxu0 0.0
    %1088 = vmatprep.subr.mxu0 0.0
    %1089 = vmatpush1.msra.mxu0 0.0
    %1090 = vmatprep.subr.mxu0 0.0
    %1091 = vmatpush1.msra.mxu0 0.0
    %1092 = vmatprep.subr.mxu0 0.0
    %1093 = vmatpush1.msra.mxu0 0.0
    %1094 = vmatprep.subr.mxu0 0.0
    %1095 = vmatpush1.msra.mxu0 0.0
    %1096 = vmatprep.subr.mxu0 0.0
    %1097 = vmatpush1.msra.mxu0 0.0
    %1098 = vmatprep.subr.mxu0 0.0
    %1099 = vmatpush1.msra.mxu0 0.0
    %1100 = vmatprep.subr.mxu0 0.0
    %1101 = vmatpush1.msra.mxu0 0.0
    %1102 = vmatprep.subr.mxu0 0.0
    %1103 = vmatpush1.msra.mxu0 0.0
    %1104 = vmatprep.subr.mxu0 0.0
    %1105 = vmatpush1.msra.mxu0 0.0
    %1106 = vmatprep.subr.mxu0 0.0
    %1107 = vmatpush1.msra.mxu0 0.0
    %1108 = vmatprep.subr.mxu0 0.0
    %1109 = vmatpush1.msra.mxu0 0.0
    %1110 = vmatprep.subr.mxu0 0.0
    %1111 = vmatpush1.msra.mxu0 0.0
    %1112 = vmatprep.subr.mxu0 0.0
    %1113 = vmatpush1.msra.mxu0 0.0
    %1114 = vmatprep.subr.mxu0 0.0
    %1115 = vmatpush1.msra.mxu0 0.0
    %1116 = vmatprep.subr.mxu0 0.0
    %1117 = vmatpush1.msra.mxu0 0.0
    %1118 = vmatprep.subr.mxu0 0.0
    %1119 = vmatpush1.msra.mxu0 0.0
    %1120 = vmatprep.subr.mxu0 0.0
    %1121 = vmatpush1.msra.mxu0 0.0
    %1122 = vmatprep.subr.mxu0 0.0
    %1123 = vmatpush1.msra.mxu0 0.0
    %1124 = vmatprep.subr.mxu0 0.0
    %1125 = vmatpush1.msra.mxu0 0.0
    %1126 = vmatprep.subr.mxu0 0.0
    %1127 = vmatpush1.msra.mxu0 0.0
    %1128 = vmatprep.subr.mxu0 0.0
    %1129 = vmatpush1.msra.mxu0 0.0
    %1130 = vmatprep.subr.mxu0 0.0
    %1131 = vmatpush1.msra.mxu0 0.0
    %1132 = vmatprep.mubr.f32.mxu0 0.0
    %1133 = vmatmul.mubr.f32.gmra.mrb[0].mxu0 %v1066
    %v1134 = vpop.f32.mrb[0].mxu0
    %v1135 = vadd.f32 0.0, %v1134
    %v1136 = vpop.f32.mrb[0].mxu0
    %1137 = vdwg.mxu0
    %1139 = vrot.lane.b32.xlu0 %v989, 8
    %v1140 = vpop.permute.xlu0 %1139
    %1143 = vrot.lane.b32.xlu0 %v1062, 16
    %v1144 = vpop.permute.xlu0 %1143
    %1147 = vrot.lane.b32.xlu0 %v1135, 24
    %v1148 = vpop.permute.xlu0 %1147
    %v1150 = vsel %vm505, %v916, %v1140
    %vm1151 = vcmask 130048
    %v1152 = vsel %vm1151, %v1150, %v1144
    %vm1153 = vcmask 195584
    %v1154 = vsel %vm1153, %v1152, %v1148
    %v1156 = vlaneseq
    %v1157 = vshrl.u32 %v1156, 7
    %v1158 = vsub.s32 0, %v1157
    %v1159 = vrot.slane %v498, %v1158
    %v1161 = vsel %vm505, %v256, 0
    %v1163 = vsel %vm505, %v348, 0
    %1165 = vmatprep.subr.mxu0 0.0
    %1166 = vmatpush1.xpose.msra.mxu0 %v1163
    %1167 = vmatprep.subr.mxu0 0.0
    %1168 = vmatpush1.xpose.msra.mxu0 0.0
    %1169 = vmatprep.subr.mxu0 0.0
    %1170 = vmatpush1.xpose.msra.mxu0 0.0
    %1171 = vmatprep.subr.mxu0 0.0
    %1172 = vmatpush1.xpose.msra.mxu0 0.0
    %1173 = vmatprep.subr.mxu0 0.0
    %1174 = vmatpush1.xpose.msra.mxu0 0.0
    %1175 = vmatprep.subr.mxu0 0.0
    %1176 = vmatpush1.xpose.msra.mxu0 0.0
    %1177 = vmatprep.subr.mxu0 0.0
    %1178 = vmatpush1.xpose.msra.mxu0 0.0
    %1179 = vmatprep.subr.mxu0 0.0
    %1180 = vmatpush1.xpose.msra.mxu0 0.0
    %1181 = vmatprep.subr.mxu0 0.0
    %1182 = vmatpush1.xpose.msra.mxu0 0.0
    %1183 = vmatprep.subr.mxu0 0.0
    %1184 = vmatpush1.xpose.msra.mxu0 0.0
    %1185 = vmatprep.subr.mxu0 0.0
    %1186 = vmatpush1.xpose.msra.mxu0 0.0
    %1187 = vmatprep.subr.mxu0 0.0
    %1188 = vmatpush1.xpose.msra.mxu0 0.0
    %1189 = vmatprep.subr.mxu0 0.0
    %1190 = vmatpush1.xpose.msra.mxu0 0.0
    %1191 = vmatprep.subr.mxu0 0.0
    %1192 = vmatpush1.xpose.msra.mxu0 0.0
    %1193 = vmatprep.subr.mxu0 0.0
    %1194 = vmatpush1.xpose.msra.mxu0 0.0
    %1195 = vmatprep.subr.mxu0 0.0
    %1196 = vmatpush1.xpose.msra.mxu0 0.0
    %1197 = vmatprep.subr.mxu0 0.0
    %1198 = vmatpush1.xpose.msra.mxu0 0.0
    %1199 = vmatprep.subr.mxu0 0.0
    %1200 = vmatpush1.xpose.msra.mxu0 0.0
    %1201 = vmatprep.subr.mxu0 0.0
    %1202 = vmatpush1.xpose.msra.mxu0 0.0
    %1203 = vmatprep.subr.mxu0 0.0
    %1204 = vmatpush1.xpose.msra.mxu0 0.0
    %1205 = vmatprep.subr.mxu0 0.0
    %1206 = vmatpush1.xpose.msra.mxu0 0.0
    %1207 = vmatprep.subr.mxu0 0.0
    %1208 = vmatpush1.xpose.msra.mxu0 0.0
    %1209 = vmatprep.subr.mxu0 0.0
    %1210 = vmatpush1.xpose.msra.mxu0 0.0
    %1211 = vmatprep.subr.mxu0 0.0
    %1212 = vmatpush1.xpose.msra.mxu0 0.0
    %1213 = vmatprep.subr.mxu0 0.0
    %1214 = vmatpush1.xpose.msra.mxu0 0.0
    %1215 = vmatprep.subr.mxu0 0.0
    %1216 = vmatpush1.xpose.msra.mxu0 0.0
    %1217 = vmatprep.subr.mxu0 0.0
    %1218 = vmatpush1.xpose.msra.mxu0 0.0
    %1219 = vmatprep.subr.mxu0 0.0
    %1220 = vmatpush1.xpose.msra.mxu0 0.0
    %1221 = vmatprep.subr.mxu0 0.0
    %1222 = vmatpush1.xpose.msra.mxu0 0.0
    %1223 = vmatprep.subr.mxu0 0.0
    %1224 = vmatpush1.xpose.msra.mxu0 0.0
    %1225 = vmatprep.subr.mxu0 0.0
    %1226 = vmatpush1.xpose.msra.mxu0 0.0
    %1227 = vmatprep.subr.mxu0 0.0
    %1228 = vmatpush1.xpose.msra.mxu0 0.0
    %1229 = vmatprep.mubr.f32.mxu0 0.0
    %1230 = vmatmul.mubr.f32.gmra.mrb[0].mxu0 %v1161
    %v1231 = vpop.f32.mrb[0].mxu0
    %v1232 = vadd.f32 %v1159, %v1231
    %v1233 = vpop.f32.mrb[0].mxu0
    %1234 = vdwg.mxu0
    %v1235 = vsel %vm505, %v450, 0
    %v1237 = vsel %vm505, %v464, 0
    %1239 = vmatprep.subr.mxu0 0.0
    %1240 = vmatpush1.xpose.msra.mxu0 %v1237
    %1241 = vmatprep.subr.mxu0 0.0
    %1242 = vmatpush1.xpose.msra.mxu0 0.0
    %1243 = vmatprep.subr.mxu0 0.0
    %1244 = vmatpush1.xpose.msra.mxu0 0.0
    %1245 = vmatprep.subr.mxu0 0.0
    %1246 = vmatpush1.xpose.msra.mxu0 0.0
    %1247 = vmatprep.subr.mxu0 0.0
    %1248 = vmatpush1.xpose.msra.mxu0 0.0
    %1249 = vmatprep.subr.mxu0 0.0
    %1250 = vmatpush1.xpose.msra.mxu0 0.0
    %1251 = vmatprep.subr.mxu0 0.0
    %1252 = vmatpush1.xpose.msra.mxu0 0.0
    %1253 = vmatprep.subr.mxu0 0.0
    %1254 = vmatpush1.xpose.msra.mxu0 0.0
    %1255 = vmatprep.subr.mxu0 0.0
    %1256 = vmatpush1.xpose.msra.mxu0 0.0
    %1257 = vmatprep.subr.mxu0 0.0
    %1258 = vmatpush1.xpose.msra.mxu0 0.0
    %1259 = vmatprep.subr.mxu0 0.0
    %1260 = vmatpush1.xpose.msra.mxu0 0.0
    %1261 = vmatprep.subr.mxu0 0.0
    %1262 = vmatpush1.xpose.msra.mxu0 0.0
    %1263 = vmatprep.subr.mxu0 0.0
    %1264 = vmatpush1.xpose.msra.mxu0 0.0
    %1265 = vmatprep.subr.mxu0 0.0
    %1266 = vmatpush1.xpose.msra.mxu0 0.0
    %1267 = vmatprep.subr.mxu0 0.0
    %1268 = vmatpush1.xpose.msra.mxu0 0.0
    %1269 = vmatprep.subr.mxu0 0.0
    %1270 = vmatpush1.xpose.msra.mxu0 0.0
    %1271 = vmatprep.subr.mxu0 0.0
    %1272 = vmatpush1.xpose.msra.mxu0 0.0
    %1273 = vmatprep.subr.mxu0 0.0
    %1274 = vmatpush1.xpose.msra.mxu0 0.0
    %1275 = vmatprep.subr.mxu0 0.0
    %1276 = vmatpush1.xpose.msra.mxu0 0.0
    %1277 = vmatprep.subr.mxu0 0.0
    %1278 = vmatpush1.xpose.msra.mxu0 0.0
    %1279 = vmatprep.subr.mxu0 0.0
    %1280 = vmatpush1.xpose.msra.mxu0 0.0
    %1281 = vmatprep.subr.mxu0 0.0
    %1282 = vmatpush1.xpose.msra.mxu0 0.0
    %1283 = vmatprep.subr.mxu0 0.0
    %1284 = vmatpush1.xpose.msra.mxu0 0.0
    %1285 = vmatprep.subr.mxu0 0.0
    %1286 = vmatpush1.xpose.msra.mxu0 0.0
    %1287 = vmatprep.subr.mxu0 0.0
    %1288 = vmatpush1.xpose.msra.mxu0 0.0
    %1289 = vmatprep.subr.mxu0 0.0
    %1290 = vmatpush1.xpose.msra.mxu0 0.0
    %1291 = vmatprep.subr.mxu0 0.0
    %1292 = vmatpush1.xpose.msra.mxu0 0.0
    %1293 = vmatprep.subr.mxu0 0.0
    %1294 = vmatpush1.xpose.msra.mxu0 0.0
    %1295 = vmatprep.subr.mxu0 0.0
    %1296 = vmatpush1.xpose.msra.mxu0 0.0
    %1297 = vmatprep.subr.mxu0 0.0
    %1298 = vmatpush1.xpose.msra.mxu0 0.0
    %1299 = vmatprep.subr.mxu0 0.0
    %1300 = vmatpush1.xpose.msra.mxu0 0.0
    %1301 = vmatprep.subr.mxu0 0.0
    %1302 = vmatpush1.xpose.msra.mxu0 0.0
    %1303 = vmatprep.mubr.f32.mxu0 0.0
    %1304 = vmatmul.mubr.f32.gmra.mrb[0].mxu0 %v1235
    %v1305 = vpop.f32.mrb[0].mxu0
    %v1306 = vadd.f32 %v1159, %v1305
    %v1307 = vpop.f32.mrb[0].mxu0
    %1308 = vdwg.mxu0
    %v1309 = vsel %vm505, %v454, 0
    %v1311 = vsel %vm505, %v468, 0
    %1313 = vmatprep.subr.mxu0 0.0
    %1314 = vmatpush1.xpose.msra.mxu0 %v1311
    %1315 = vmatprep.subr.mxu0 0.0
    %1316 = vmatpush1.xpose.msra.mxu0 0.0
    %1317 = vmatprep.subr.mxu0 0.0
    %1318 = vmatpush1.xpose.msra.mxu0 0.0
    %1319 = vmatprep.subr.mxu0 0.0
    %1320 = vmatpush1.xpose.msra.mxu0 0.0
    %1321 = vmatprep.subr.mxu0 0.0
    %1322 = vmatpush1.xpose.msra.mxu0 0.0
    %1323 = vmatprep.subr.mxu0 0.0
    %1324 = vmatpush1.xpose.msra.mxu0 0.0
    %1325 = vmatprep.subr.mxu0 0.0
    %1326 = vmatpush1.xpose.msra.mxu0 0.0
    %1327 = vmatprep.subr.mxu0 0.0
    %1328 = vmatpush1.xpose.msra.mxu0 0.0
    %1329 = vmatprep.subr.mxu0 0.0
    %1330 = vmatpush1.xpose.msra.mxu0 0.0
    %1331 = vmatprep.subr.mxu0 0.0
    %1332 = vmatpush1.xpose.msra.mxu0 0.0
    %1333 = vmatprep.subr.mxu0 0.0
    %1334 = vmatpush1.xpose.msra.mxu0 0.0
    %1335 = vmatprep.subr.mxu0 0.0
    %1336 = vmatpush1.xpose.msra.mxu0 0.0
    %1337 = vmatprep.subr.mxu0 0.0
    %1338 = vmatpush1.xpose.msra.mxu0 0.0
    %1339 = vmatprep.subr.mxu0 0.0
    %1340 = vmatpush1.xpose.msra.mxu0 0.0
    %1341 = vmatprep.subr.mxu0 0.0
    %1342 = vmatpush1.xpose.msra.mxu0 0.0
    %1343 = vmatprep.subr.mxu0 0.0
    %1344 = vmatpush1.xpose.msra.mxu0 0.0
    %1345 = vmatprep.subr.mxu0 0.0
    %1346 = vmatpush1.xpose.msra.mxu0 0.0
    %1347 = vmatprep.subr.mxu0 0.0
    %1348 = vmatpush1.xpose.msra.mxu0 0.0
    %1349 = vmatprep.subr.mxu0 0.0
    %1350 = vmatpush1.xpose.msra.mxu0 0.0
    %1351 = vmatprep.subr.mxu0 0.0
    %1352 = vmatpush1.xpose.msra.mxu0 0.0
    %1353 = vmatprep.subr.mxu0 0.0
    %1354 = vmatpush1.xpose.msra.mxu0 0.0
    %1355 = vmatprep.subr.mxu0 0.0
    %1356 = vmatpush1.xpose.msra.mxu0 0.0
    %1357 = vmatprep.subr.mxu0 0.0
    %1358 = vmatpush1.xpose.msra.mxu0 0.0
    %1359 = vmatprep.subr.mxu0 0.0
    %1360 = vmatpush1.xpose.msra.mxu0 0.0
    %1361 = vmatprep.subr.mxu0 0.0
    %1362 = vmatpush1.xpose.msra.mxu0 0.0
    %1363 = vmatprep.subr.mxu0 0.0
    %1364 = vmatpush1.xpose.msra.mxu0 0.0
    %1365 = vmatprep.subr.mxu0 0.0
    %1366 = vmatpush1.xpose.msra.mxu0 0.0
    %1367 = vmatprep.subr.mxu0 0.0
    %1368 = vmatpush1.xpose.msra.mxu0 0.0
    %1369 = vmatprep.subr.mxu0 0.0
    %1370 = vmatpush1.xpose.msra.mxu0 0.0
    %1371 = vmatprep.subr.mxu0 0.0
    %1372 = vmatpush1.xpose.msra.mxu0 0.0
    %1373 = vmatprep.subr.mxu0 0.0
    %1374 = vmatpush1.xpose.msra.mxu0 0.0
    %1375 = vmatprep.subr.mxu0 0.0
    %1376 = vmatpush1.xpose.msra.mxu0 0.0
    %1377 = vmatprep.mubr.f32.mxu0 0.0
    %1378 = vmatmul.mubr.f32.gmra.mrb[0].mxu0 %v1309
    %v1379 = vpop.f32.mrb[0].mxu0
    %v1380 = vadd.f32 %v1159, %v1379
    %v1381 = vpop.f32.mrb[0].mxu0
    %1382 = vdwg.mxu0
    %v1383 = vsel %vm505, %v458, 0
    %v1385 = vsel %vm505, %v472, 0
    %1387 = vmatprep.subr.mxu0 0.0
    %1388 = vmatpush1.xpose.msra.mxu0 %v1385
    %1389 = vmatprep.subr.mxu0 0.0
    %1390 = vmatpush1.xpose.msra.mxu0 0.0
    %1391 = vmatprep.subr.mxu0 0.0
    %1392 = vmatpush1.xpose.msra.mxu0 0.0
    %1393 = vmatprep.subr.mxu0 0.0
    %1394 = vmatpush1.xpose.msra.mxu0 0.0
    %1395 = vmatprep.subr.mxu0 0.0
    %1396 = vmatpush1.xpose.msra.mxu0 0.0
    %1397 = vmatprep.subr.mxu0 0.0
    %1398 = vmatpush1.xpose.msra.mxu0 0.0
    %1399 = vmatprep.subr.mxu0 0.0
    %1400 = vmatpush1.xpose.msra.mxu0 0.0
    %1401 = vmatprep.subr.mxu0 0.0
    %1402 = vmatpush1.xpose.msra.mxu0 0.0
    %1403 = vmatprep.subr.mxu0 0.0
    %1404 = vmatpush1.xpose.msra.mxu0 0.0
    %1405 = vmatprep.subr.mxu0 0.0
    %1406 = vmatpush1.xpose.msra.mxu0 0.0
    %1407 = vmatprep.subr.mxu0 0.0
    %1408 = vmatpush1.xpose.msra.mxu0 0.0
    %1409 = vmatprep.subr.mxu0 0.0
    %1410 = vmatpush1.xpose.msra.mxu0 0.0
    %1411 = vmatprep.subr.mxu0 0.0
    %1412 = vmatpush1.xpose.msra.mxu0 0.0
    %1413 = vmatprep.subr.mxu0 0.0
    %1414 = vmatpush1.xpose.msra.mxu0 0.0
    %1415 = vmatprep.subr.mxu0 0.0
    %1416 = vmatpush1.xpose.msra.mxu0 0.0
    %1417 = vmatprep.subr.mxu0 0.0
    %1418 = vmatpush1.xpose.msra.mxu0 0.0
    %1419 = vmatprep.subr.mxu0 0.0
    %1420 = vmatpush1.xpose.msra.mxu0 0.0
    %1421 = vmatprep.subr.mxu0 0.0
    %1422 = vmatpush1.xpose.msra.mxu0 0.0
    %1423 = vmatprep.subr.mxu0 0.0
    %1424 = vmatpush1.xpose.msra.mxu0 0.0
    %1425 = vmatprep.subr.mxu0 0.0
    %1426 = vmatpush1.xpose.msra.mxu0 0.0
    %1427 = vmatprep.subr.mxu0 0.0
    %1428 = vmatpush1.xpose.msra.mxu0 0.0
    %1429 = vmatprep.subr.mxu0 0.0
    %1430 = vmatpush1.xpose.msra.mxu0 0.0
    %1431 = vmatprep.subr.mxu0 0.0
    %1432 = vmatpush1.xpose.msra.mxu0 0.0
    %1433 = vmatprep.subr.mxu0 0.0
    %1434 = vmatpush1.xpose.msra.mxu0 0.0
    %1435 = vmatprep.subr.mxu0 0.0
    %1436 = vmatpush1.xpose.msra.mxu0 0.0
    %1437 = vmatprep.subr.mxu0 0.0
    %1438 = vmatpush1.xpose.msra.mxu0 0.0
    %1439 = vmatprep.subr.mxu0 0.0
    %1440 = vmatpush1.xpose.msra.mxu0 0.0
    %1441 = vmatprep.subr.mxu0 0.0
    %1442 = vmatpush1.xpose.msra.mxu0 0.0
    %1443 = vmatprep.subr.mxu0 0.0
    %1444 = vmatpush1.xpose.msra.mxu0 0.0
    %1445 = vmatprep.subr.mxu0 0.0
    %1446 = vmatpush1.xpose.msra.mxu0 0.0
    %1447 = vmatprep.subr.mxu0 0.0
    %1448 = vmatpush1.xpose.msra.mxu0 0.0
    %1449 = vmatprep.subr.mxu0 0.0
    %1450 = vmatpush1.xpose.msra.mxu0 0.0
    %1451 = vmatprep.mubr.f32.mxu0 0.0
    %1452 = vmatmul.mubr.f32.gmra.mrb[0].mxu0 %v1383
    %v1453 = vpop.f32.mrb[0].mxu0
    %v1454 = vadd.f32 %v1159, %v1453
    %v1455 = vpop.f32.mrb[0].mxu0
    %1456 = vdwg.mxu0
    %v1457 = vsel %vm505, %v1232, -inf
    %1458 = vmax.xlane.f32.xlu0 %v1457
    %v1459 = vpop.xlane.xlu0 %1458
    %v1460 = vsel %vm505, %v1306, -inf
    %1461 = vmax.xlane.f32.xlu0 %v1460
    %v1462 = vpop.xlane.xlu0 %1461
    %v1463 = vsel %vm505, %v1380, -inf
    %1464 = vmax.xlane.f32.xlu0 %v1463
    %v1465 = vpop.xlane.xlu0 %1464
    %v1466 = vsel %vm505, %v1454, -inf
    %1467 = vmax.xlane.f32.xlu0 %v1466
    %v1468 = vpop.xlane.xlu0 %1467
    %v1469 = vsub.f32 %v1232, %v1459
    %v1470 = vsub.f32 %v1306, %v1462
    %v1471 = vsub.f32 %v1380, %v1465
    %v1472 = vsub.f32 %v1454, %v1468
    %v1473 = vmul.f32 %v1469, 1.442695
    %v1474 = vpow.pop %v1473
    %v1475 = vmul.f32 %v1470, 1.442695
    %v1476 = vpow.pop %v1475
    %v1477 = vmul.f32 %v1471, 1.442695
    %v1478 = vpow.pop %v1477
    %v1479 = vmul.f32 %v1472, 1.442695
    %v1480 = vpow.pop %v1479
    %v1481 = vsel %vm505, %v1474, 0.0
    %1482 = vadd.xlane.f32.xlu0 %v1481
    %v1483 = vpop.xlane.xlu0 %1482
    %v1484 = vsel %vm505, %v1476, 0.0
    %1485 = vadd.xlane.f32.xlu0 %v1484
    %v1486 = vpop.xlane.xlu0 %1485
    %v1487 = vsel %vm505, %v1478, 0.0
    %1488 = vadd.xlane.f32.xlu0 %v1487
    %v1489 = vpop.xlane.xlu0 %1488
    %v1490 = vsel %vm505, %v1480, 0.0
    %1491 = vadd.xlane.f32.xlu0 %v1490
    %v1492 = vpop.xlane.xlu0 %1491
    %v1493 = vrcp.pop %v1483
    %v1494 = vrcp.pop %v1486
    %v1495 = vrcp.pop %v1489
    %v1496 = vrcp.pop %v1492
    %v1497 = vmul.f32 %v1474, %v1493
    %v1498 = vmul.f32 %v1476, %v1494
    %v1499 = vmul.f32 %v1478, %v1495
    %v1500 = vmul.f32 %v1480, %v1496
    %v1502 = vsel %vm505, %v1497, 0
    %1504 = vmatprep.subr.mxu0 0.0
    %1505 = vmatpush1.msra.mxu0 %v442
    %1506 = vmatprep.subr.mxu0 0.0
    %1507 = vmatpush1.msra.mxu0 0.0
    %1508 = vmatprep.subr.mxu0 0.0
    %1509 = vmatpush1.msra.mxu0 0.0
    %1510 = vmatprep.subr.mxu0 0.0
    %1511 = vmatpush1.msra.mxu0 0.0
    %1512 = vmatprep.subr.mxu0 0.0
    %1513 = vmatpush1.msra.mxu0 0.0
    %1514 = vmatprep.subr.mxu0 0.0
    %1515 = vmatpush1.msra.mxu0 0.0
    %1516 = vmatprep.subr.mxu0 0.0
    %1517 = vmatpush1.msra.mxu0 0.0
    %1518 = vmatprep.subr.mxu0 0.0
    %1519 = vmatpush1.msra.mxu0 0.0
    %1520 = vmatprep.subr.mxu0 0.0
    %1521 = vmatpush1.msra.mxu0 0.0
    %1522 = vmatprep.subr.mxu0 0.0
    %1523 = vmatpush1.msra.mxu0 0.0
    %1524 = vmatprep.subr.mxu0 0.0
    %1525 = vmatpush1.msra.mxu0 0.0
    %1526 = vmatprep.subr.mxu0 0.0
    %1527 = vmatpush1.msra.mxu0 0.0
    %1528 = vmatprep.subr.mxu0 0.0
    %1529 = vmatpush1.msra.mxu0 0.0
    %1530 = vmatprep.subr.mxu0 0.0
    %1531 = vmatpush1.msra.mxu0 0.0
    %1532 = vmatprep.subr.mxu0 0.0
    %1533 = vmatpush1.msra.mxu0 0.0
    %1534 = vmatprep.subr.mxu0 0.0
    %1535 = vmatpush1.msra.mxu0 0.0
    %1536 = vmatprep.subr.mxu0 0.0
    %1537 = vmatpush1.msra.mxu0 0.0
    %1538 = vmatprep.subr.mxu0 0.0
    %1539 = vmatpush1.msra.mxu0 0.0
    %1540 = vmatprep.subr.mxu0 0.0
    %1541 = vmatpush1.msra.mxu0 0.0
    %1542 = vmatprep.subr.mxu0 0.0
    %1543 = vmatpush1.msra.mxu0 0.0
    %1544 = vmatprep.subr.mxu0 0.0
    %1545 = vmatpush1.msra.mxu0 0.0
    %1546 = vmatprep.subr.mxu0 0.0
    %1547 = vmatpush1.msra.mxu0 0.0
    %1548 = vmatprep.subr.mxu0 0.0
    %1549 = vmatpush1.msra.mxu0 0.0
    %1550 = vmatprep.subr.mxu0 0.0
    %1551 = vmatpush1.msra.mxu0 0.0
    %1552 = vmatprep.subr.mxu0 0.0
    %1553 = vmatpush1.msra.mxu0 0.0
    %1554 = vmatprep.subr.mxu0 0.0
    %1555 = vmatpush1.msra.mxu0 0.0
    %1556 = vmatprep.subr.mxu0 0.0
    %1557 = vmatpush1.msra.mxu0 0.0
    %1558 = vmatprep.subr.mxu0 0.0
    %1559 = vmatpush1.msra.mxu0 0.0
    %1560 = vmatprep.subr.mxu0 0.0
    %1561 = vmatpush1.msra.mxu0 0.0
    %1562 = vmatprep.subr.mxu0 0.0
    %1563 = vmatpush1.msra.mxu0 0.0
    %1564 = vmatprep.subr.mxu0 0.0
    %1565 = vmatpush1.msra.mxu0 0.0
    %1566 = vmatprep.subr.mxu0 0.0
    %1567 = vmatpush1.msra.mxu0 0.0
    %1568 = vmatprep.mubr.f32.mxu0 0.0
    %1569 = vmatmul.mubr.f32.gmra.mrb[0].mxu0 %v1502
    %v1570 = vpop.f32.mrb[0].mxu0
    %v1571 = vadd.f32 0.0, %v1570
    %v1572 = vpop.f32.mrb[0].mxu0
    %1573 = vdwg.mxu0
    %v1575 = vsel %vm505, %v1498, 0
    %1577 = vmatprep.subr.mxu0 0.0
    %1578 = vmatpush1.msra.mxu0 %v478
    %1579 = vmatprep.subr.mxu0 0.0
    %1580 = vmatpush1.msra.mxu0 0.0
    %1581 = vmatprep.subr.mxu0 0.0
    %1582 = vmatpush1.msra.mxu0 0.0
    %1583 = vmatprep.subr.mxu0 0.0
    %1584 = vmatpush1.msra.mxu0 0.0
    %1585 = vmatprep.subr.mxu0 0.0
    %1586 = vmatpush1.msra.mxu0 0.0
    %1587 = vmatprep.subr.mxu0 0.0
    %1588 = vmatpush1.msra.mxu0 0.0
    %1589 = vmatprep.subr.mxu0 0.0
    %1590 = vmatpush1.msra.mxu0 0.0
    %1591 = vmatprep.subr.mxu0 0.0
    %1592 = vmatpush1.msra.mxu0 0.0
    %1593 = vmatprep.subr.mxu0 0.0
    %1594 = vmatpush1.msra.mxu0 0.0
    %1595 = vmatprep.subr.mxu0 0.0
    %1596 = vmatpush1.msra.mxu0 0.0
    %1597 = vmatprep.subr.mxu0 0.0
    %1598 = vmatpush1.msra.mxu0 0.0
    %1599 = vmatprep.subr.mxu0 0.0
    %1600 = vmatpush1.msra.mxu0 0.0
    %1601 = vmatprep.subr.mxu0 0.0
    %1602 = vmatpush1.msra.mxu0 0.0
    %1603 = vmatprep.subr.mxu0 0.0
    %1604 = vmatpush1.msra.mxu0 0.0
    %1605 = vmatprep.subr.mxu0 0.0
    %1606 = vmatpush1.msra.mxu0 0.0
    %1607 = vmatprep.subr.mxu0 0.0
    %1608 = vmatpush1.msra.mxu0 0.0
    %1609 = vmatprep.subr.mxu0 0.0
    %1610 = vmatpush1.msra.mxu0 0.0
    %1611 = vmatprep.subr.mxu0 0.0
    %1612 = vmatpush1.msra.mxu0 0.0
    %1613 = vmatprep.subr.mxu0 0.0
    %1614 = vmatpush1.msra.mxu0 0.0
    %1615 = vmatprep.subr.mxu0 0.0
    %1616 = vmatpush1.msra.mxu0 0.0
    %1617 = vmatprep.subr.mxu0 0.0
    %1618 = vmatpush1.msra.mxu0 0.0
    %1619 = vmatprep.subr.mxu0 0.0
    %1620 = vmatpush1.msra.mxu0 0.0
    %1621 = vmatprep.subr.mxu0 0.0
    %1622 = vmatpush1.msra.mxu0 0.0
    %1623 = vmatprep.subr.mxu0 0.0
    %1624 = vmatpush1.msra.mxu0 0.0
    %1625 = vmatprep.subr.mxu0 0.0
    %1626 = vmatpush1.msra.mxu0 0.0
    %1627 = vmatprep.subr.mxu0 0.0
    %1628 = vmatpush1.msra.mxu0 0.0
    %1629 = vmatprep.subr.mxu0 0.0
    %1630 = vmatpush1.msra.mxu0 0.0
    %1631 = vmatprep.subr.mxu0 0.0
    %1632 = vmatpush1.msra.mxu0 0.0
    %1633 = vmatprep.subr.mxu0 0.0
    %1634 = vmatpush1.msra.mxu0 0.0
    %1635 = vmatprep.subr.mxu0 0.0
    %1636 = vmatpush1.msra.mxu0 0.0
    %1637 = vmatprep.subr.mxu0 0.0
    %1638 = vmatpush1.msra.mxu0 0.0
    %1639 = vmatprep.subr.mxu0 0.0
    %1640 = vmatpush1.msra.mxu0 0.0
    %1641 = vmatprep.mubr.f32.mxu0 0.0
    %1642 = vmatmul.mubr.f32.gmra.mrb[0].mxu0 %v1575
    %v1643 = vpop.f32.mrb[0].mxu0
    %v1644 = vadd.f32 0.0, %v1643
    %v1645 = vpop.f32.mrb[0].mxu0
    %1646 = vdwg.mxu0
    %v1648 = vsel %vm505, %v1499, 0
    %1650 = vmatprep.subr.mxu0 0.0
    %1651 = vmatpush1.msra.mxu0 %v484
    %1652 = vmatprep.subr.mxu0 0.0
    %1653 = vmatpush1.msra.mxu0 0.0
    %1654 = vmatprep.subr.mxu0 0.0
    %1655 = vmatpush1.msra.mxu0 0.0
    %1656 = vmatprep.subr.mxu0 0.0
    %1657 = vmatpush1.msra.mxu0 0.0
    %1658 = vmatprep.subr.mxu0 0.0
    %1659 = vmatpush1.msra.mxu0 0.0
    %1660 = vmatprep.subr.mxu0 0.0
    %1661 = vmatpush1.msra.mxu0 0.0
    %1662 = vmatprep.subr.mxu0 0.0
    %1663 = vmatpush1.msra.mxu0 0.0
    %1664 = vmatprep.subr.mxu0 0.0
    %1665 = vmatpush1.msra.mxu0 0.0
    %1666 = vmatprep.subr.mxu0 0.0
    %1667 = vmatpush1.msra.mxu0 0.0
    %1668 = vmatprep.subr.mxu0 0.0
    %1669 = vmatpush1.msra.mxu0 0.0
    %1670 = vmatprep.subr.mxu0 0.0
    %1671 = vmatpush1.msra.mxu0 0.0
    %1672 = vmatprep.subr.mxu0 0.0
    %1673 = vmatpush1.msra.mxu0 0.0
    %1674 = vmatprep.subr.mxu0 0.0
    %1675 = vmatpush1.msra.mxu0 0.0
    %1676 = vmatprep.subr.mxu0 0.0
    %1677 = vmatpush1.msra.mxu0 0.0
    %1678 = vmatprep.subr.mxu0 0.0
    %1679 = vmatpush1.msra.mxu0 0.0
    %1680 = vmatprep.subr.mxu0 0.0
    %1681 = vmatpush1.msra.mxu0 0.0
    %1682 = vmatprep.subr.mxu0 0.0
    %1683 = vmatpush1.msra.mxu0 0.0
    %1684 = vmatprep.subr.mxu0 0.0
    %1685 = vmatpush1.msra.mxu0 0.0
    %1686 = vmatprep.subr.mxu0 0.0
    %1687 = vmatpush1.msra.mxu0 0.0
    %1688 = vmatprep.subr.mxu0 0.0
    %1689 = vmatpush1.msra.mxu0 0.0
    %1690 = vmatprep.subr.mxu0 0.0
    %1691 = vmatpush1.msra.mxu0 0.0
    %1692 = vmatprep.subr.mxu0 0.0
    %1693 = vmatpush1.msra.mxu0 0.0
    %1694 = vmatprep.subr.mxu0 0.0
    %1695 = vmatpush1.msra.mxu0 0.0
    %1696 = vmatprep.subr.mxu0 0.0
    %1697 = vmatpush1.msra.mxu0 0.0
    %1698 = vmatprep.subr.mxu0 0.0
    %1699 = vmatpush1.msra.mxu0 0.0
    %1700 = vmatprep.subr.mxu0 0.0
    %1701 = vmatpush1.msra.mxu0 0.0
    %1702 = vmatprep.subr.mxu0 0.0
    %1703 = vmatpush1.msra.mxu0 0.0
    %1704 = vmatprep.subr.mxu0 0.0
    %1705 = vmatpush1.msra.mxu0 0.0
    %1706 = vmatprep.subr.mxu0 0.0
    %1707 = vmatpush1.msra.mxu0 0.0
    %1708 = vmatprep.subr.mxu0 0.0
    %1709 = vmatpush1.msra.mxu0 0.0
    %1710 = vmatprep.subr.mxu0 0.0
    %1711 = vmatpush1.msra.mxu0 0.0
    %1712 = vmatprep.subr.mxu0 0.0
    %1713 = vmatpush1.msra.mxu0 0.0
    %1714 = vmatprep.mubr.f32.mxu0 0.0
    %1715 = vmatmul.mubr.f32.gmra.mrb[0].mxu0 %v1648
    %v1716 = vpop.f32.mrb[0].mxu0
    %v1717 = vadd.f32 0.0, %v1716
    %v1718 = vpop.f32.mrb[0].mxu0
    %1719 = vdwg.mxu0
    %v1721 = vsel %vm505, %v1500, 0
    %1723 = vmatprep.subr.mxu0 0.0
    %1724 = vmatpush1.msra.mxu0 %v490
    %1725 = vmatprep.subr.mxu0 0.0
    %1726 = vmatpush1.msra.mxu0 0.0
    %1727 = vmatprep.subr.mxu0 0.0
    %1728 = vmatpush1.msra.mxu0 0.0
    %1729 = vmatprep.subr.mxu0 0.0
    %1730 = vmatpush1.msra.mxu0 0.0
    %1731 = vmatprep.subr.mxu0 0.0
    %1732 = vmatpush1.msra.mxu0 0.0
    %1733 = vmatprep.subr.mxu0 0.0
    %1734 = vmatpush1.msra.mxu0 0.0
    %1735 = vmatprep.subr.mxu0 0.0
    %1736 = vmatpush1.msra.mxu0 0.0
    %1737 = vmatprep.subr.mxu0 0.0
    %1738 = vmatpush1.msra.mxu0 0.0
    %1739 = vmatprep.subr.mxu0 0.0
    %1740 = vmatpush1.msra.mxu0 0.0
    %1741 = vmatprep.subr.mxu0 0.0
    %1742 = vmatpush1.msra.mxu0 0.0
    %1743 = vmatprep.subr.mxu0 0.0
    %1744 = vmatpush1.msra.mxu0 0.0
    %1745 = vmatprep.subr.mxu0 0.0
    %1746 = vmatpush1.msra.mxu0 0.0
    %1747 = vmatprep.subr.mxu0 0.0
    %1748 = vmatpush1.msra.mxu0 0.0
    %1749 = vmatprep.subr.mxu0 0.0
    %1750 = vmatpush1.msra.mxu0 0.0
    %1751 = vmatprep.subr.mxu0 0.0
    %1752 = vmatpush1.msra.mxu0 0.0
    %1753 = vmatprep.subr.mxu0 0.0
    %1754 = vmatpush1.msra.mxu0 0.0
    %1755 = vmatprep.subr.mxu0 0.0
    %1756 = vmatpush1.msra.mxu0 0.0
    %1757 = vmatprep.subr.mxu0 0.0
    %1758 = vmatpush1.msra.mxu0 0.0
    %1759 = vmatprep.subr.mxu0 0.0
    %1760 = vmatpush1.msra.mxu0 0.0
    %1761 = vmatprep.subr.mxu0 0.0
    %1762 = vmatpush1.msra.mxu0 0.0
    %1763 = vmatprep.subr.mxu0 0.0
    %1764 = vmatpush1.msra.mxu0 0.0
    %1765 = vmatprep.subr.mxu0 0.0
    %1766 = vmatpush1.msra.mxu0 0.0
    %1767 = vmatprep.subr.mxu0 0.0
    %1768 = vmatpush1.msra.mxu0 0.0
    %1769 = vmatprep.subr.mxu0 0.0
    %1770 = vmatpush1.msra.mxu0 0.0
    %1771 = vmatprep.subr.mxu0 0.0
    %1772 = vmatpush1.msra.mxu0 0.0
    %1773 = vmatprep.subr.mxu0 0.0
    %1774 = vmatpush1.msra.mxu0 0.0
    %1775 = vmatprep.subr.mxu0 0.0
    %1776 = vmatpush1.msra.mxu0 0.0
    %1777 = vmatprep.subr.mxu0 0.0
    %1778 = vmatpush1.msra.mxu0 0.0
    %1779 = vmatprep.subr.mxu0 0.0
    %1780 = vmatpush1.msra.mxu0 0.0
    %1781 = vmatprep.subr.mxu0 0.0
    %1782 = vmatpush1.msra.mxu0 0.0
    %1783 = vmatprep.subr.mxu0 0.0
    %1784 = vmatpush1.msra.mxu0 0.0
    %1785 = vmatprep.subr.mxu0 0.0
    %1786 = vmatpush1.msra.mxu0 0.0
    %1787 = vmatprep.mubr.f32.mxu0 0.0
    %1788 = vmatmul.mubr.f32.gmra.mrb[0].mxu0 %v1721
    %v1789 = vpop.f32.mrb[0].mxu0
    %v1790 = vadd.f32 0.0, %v1789
    %v1791 = vpop.f32.mrb[0].mxu0
    %1792 = vdwg.mxu0
    %1794 = vrot.lane.b32.xlu0 %v1644, 8
    %v1795 = vpop.permute.xlu0 %1794
    %1798 = vrot.lane.b32.xlu0 %v1717, 16
    %v1799 = vpop.permute.xlu0 %1798
    %1802 = vrot.lane.b32.xlu0 %v1790, 24
    %v1803 = vpop.permute.xlu0 %1802
    %v1805 = vsel %vm505, %v1571, %v1795
    %v1806 = vsel %vm1151, %v1805, %v1799
    %v1807 = vsel %vm1153, %v1806, %v1803
    %v1808 = vld [vmem:[#allocation14] sm:$0xff]
    %v1809 = vld [vmem:[#allocation14 + $0x8] sm:$0xff]
    %v1810 = vld [vmem:[#allocation14 + $0x10] sm:$0xff]
    %v1811 = vld [vmem:[#allocation14 + $0x18] sm:$0xff]
    %v1812 = vld [vmem:[#allocation16] sm:$0x1]
    %v1814 = vlaneseq
    %v1815 = vshrl.u32 %v1814, 7
    %v1816 = vsub.s32 0, %v1815
    %v1817 = vrot.slane %v1812, %v1816
    %v1820 = vsel %vm173, %v1154, 0
    %v1823 = vsel %vm173, %v1807, 0
    %1825 = vmatprep.subr.mxu0 0.0
    %1826 = vmatpush1.msra.mxu0 %v1808
    %1827 = vmatprep.subr.mxu0 0.0
    %1828 = vmatpush1.msra.mxu0 %v1809
    %1829 = vmatprep.subr.mxu0 0.0
    %1830 = vmatpush1.msra.mxu0 %v1810
    %1831 = vmatprep.subr.mxu0 0.0
    %1832 = vmatpush1.msra.mxu0 %v1811
    %1833 = vmatprep.subr.mxu0 0.0
    %1834 = vmatpush1.msra.mxu0 0.0
    %1835 = vmatprep.subr.mxu0 0.0
    %1836 = vmatpush1.msra.mxu0 0.0
    %1837 = vmatprep.subr.mxu0 0.0
    %1838 = vmatpush1.msra.mxu0 0.0
    %1839 = vmatprep.subr.mxu0 0.0
    %1840 = vmatpush1.msra.mxu0 0.0
    %1841 = vmatprep.subr.mxu0 0.0
    %1842 = vmatpush1.msra.mxu0 0.0
    %1843 = vmatprep.subr.mxu0 0.0
    %1844 = vmatpush1.msra.mxu0 0.0
    %1845 = vmatprep.subr.mxu0 0.0
    %1846 = vmatpush1.msra.mxu0 0.0
    %1847 = vmatprep.subr.mxu0 0.0
    %1848 = vmatpush1.msra.mxu0 0.0
    %1849 = vmatprep.subr.mxu0 0.0
    %1850 = vmatpush1.msra.mxu0 0.0
    %1851 = vmatprep.subr.mxu0 0.0
    %1852 = vmatpush1.msra.mxu0 0.0
    %1853 = vmatprep.subr.mxu0 0.0
    %1854 = vmatpush1.msra.mxu0 0.0
    %1855 = vmatprep.subr.mxu0 0.0
    %1856 = vmatpush1.msra.mxu0 0.0
    %1857 = vmatprep.subr.mxu0 0.0
    %1858 = vmatpush1.msra.mxu0 0.0
    %1859 = vmatprep.subr.mxu0 0.0
    %1860 = vmatpush1.msra.mxu0 0.0
    %1861 = vmatprep.subr.mxu0 0.0
    %1862 = vmatpush1.msra.mxu0 0.0
    %1863 = vmatprep.subr.mxu0 0.0
    %1864 = vmatpush1.msra.mxu0 0.0
    %1865 = vmatprep.subr.mxu0 0.0
    %1866 = vmatpush1.msra.mxu0 0.0
    %1867 = vmatprep.subr.mxu0 0.0
    %1868 = vmatpush1.msra.mxu0 0.0
    %1869 = vmatprep.subr.mxu0 0.0
    %1870 = vmatpush1.msra.mxu0 0.0
    %1871 = vmatprep.subr.mxu0 0.0
    %1872 = vmatpush1.msra.mxu0 0.0
    %1873 = vmatprep.subr.mxu0 0.0
    %1874 = vmatpush1.msra.mxu0 0.0
    %1875 = vmatprep.subr.mxu0 0.0
    %1876 = vmatpush1.msra.mxu0 0.0
    %1877 = vmatprep.subr.mxu0 0.0
    %1878 = vmatpush1.msra.mxu0 0.0
    %1879 = vmatprep.subr.mxu0 0.0
    %1880 = vmatpush1.msra.mxu0 0.0
    %1881 = vmatprep.subr.mxu0 0.0
    %1882 = vmatpush1.msra.mxu0 0.0
    %1883 = vmatprep.subr.mxu0 0.0
    %1884 = vmatpush1.msra.mxu0 0.0
    %1885 = vmatprep.subr.mxu0 0.0
    %1886 = vmatpush1.msra.mxu0 0.0
    %1887 = vmatprep.subr.mxu0 0.0
    %1888 = vmatpush1.msra.mxu0 0.0
    %1889 = vmatprep.mubr.f32.mxu0 0.0
    %1890 = vmatmul.mubr.f32.gmra.mrb[0].mxu0 %v1820
    %v1891 = vpop.f32.mrb[0].mxu0
    %v1892 = vadd.f32 %v1817, %v1891
    %v1893 = vpop.f32.mrb[0].mxu0
    %1894 = vmatprep.mubr.f32.mxu0 0.0
    %1895 = vmatmul.mubr.f32.gmra.mrb[0].mxu0 %v1823
    %v1896 = vpop.f32.mrb[0].mxu0
    %v1897 = vadd.f32 %v1817, %v1896
    %v1898 = vpop.f32.mrb[0].mxu0
    %1899 = vdwg.mxu0
    %1900 = vst.msk [vmem:[#allocation17] sm:$0xff] %vm173, %v1892
    %1901 = vst.msk [vmem:[#allocation17 + $0x8] sm:$0xff] %vm173, %v1897
    %1902 = vrot.lane.b32.xlu0 %v843, 8
    %v1903 = vpop.permute.xlu0 %1902
    %1905 = vrot.lane.b32.xlu0 %v844, 16
    %v1906 = vpop.permute.xlu0 %1905
    %1908 = vrot.lane.b32.xlu0 %v845, 24
    %v1909 = vpop.permute.xlu0 %1908
    %1911 = vrot.lane.b32.xlu0 %v1497, 32
    %v1912 = vpop.permute.xlu0 %1911
    %1914 = vrot.lane.b32.xlu0 %v1498, 40
    %v1915 = vpop.permute.xlu0 %1914
    %1917 = vrot.lane.b32.xlu0 %v1499, 48
    %v1918 = vpop.permute.xlu0 %1917
    %1920 = vrot.lane.b32.xlu0 %v1500, 56
    %v1921 = vpop.permute.xlu0 %1920
    %v1923 = vsel %vm505, %v842, %v1903
    %v1924 = vsel %vm1151, %v1923, %v1906
    %v1925 = vsel %vm1153, %v1924, %v1909
    %v1926 = vsel %vm173, %v1925, %v1912
    %vm1927 = vcmask 326656
    %v1928 = vsel %vm1927, %v1926, %v1915
    %vm1929 = vcmask 392192
    %v1930 = vsel %vm1929, %v1928, %v1918
    %vm1931 = vcmask 457728
    %v1932 = vsel %vm1931, %v1930, %v1921
    %vm1933 = vcmask 523264
    %1934 = vst.msk [vmem:[%s13] sm:$0xff] %vm1933, %v1932
    // Predicated region
    $region86: #{multi_head_attention.1} parent=1 // pred_check
      _
    $region87: #{multi_head_attention.1} parent=1 // pred_check_branch
      %1936 = sbr.rel (0) target = $region89
    $region88: #{multi_head_attention.1} parent=1 // pred_region
      %s1938 = ssub.s32 256, 256
      %1939 = vsyncadd [#allocation4], %s1938
      %s1940 = sshll.u32 [#allocation17], 4
      %s1941 = int_to_ptr.vmem [resolvable:$true] %s1940
      %1946 = dma.vmem_to_hbm [thread:$0]  %s1941, 256, %s12, [#allocation4], 128, 128, 8
    $region89: #{multi_head_attention.1} parent=1 // pred_fallthru
      _
    // Predicated region
    $region90: #{multi_head_attention.1} parent=1 // pred_check
      _
    $region91: #{multi_head_attention.1} parent=1 // pred_check_branch
      %1948 = sbr.rel (0) target = $region93
    $region92: #{multi_head_attention.1} parent=1 // pred_region
      _
    $region93: #{multi_head_attention.1} parent=1 // pred_fallthru
      _
    // Predicated region
    $region94: #{multi_head_attention.1} parent=1 // pred_check
      _
    $region95: #{multi_head_attention.1} parent=1 // pred_check_branch
      %1950 = sbr.rel (0) target = $region97
    $region96: #{multi_head_attention.1} parent=1 // pred_region
      %1951 = dma.done [#allocation4], 256
    $region97: #{multi_head_attention.1} parent=1 // pred_fallthru
      _
    // Predicated region
    $region98: #{multi_head_attention.1} parent=1 // pred_check
      _
    $region99: #{multi_head_attention.1} parent=1 // pred_check_branch
      %1953 = sbr.rel (0) target = $region101
    $region100: #{multi_head_attention.1} parent=1 // pred_region
      _
    $region101: #{multi_head_attention.1} parent=1 // pred_fallthru
      _
    %1954 = vsyncpa [#allocation3], 1
    %1955 = vsyncpa [#allocation6], 1
    %1956 = vsyncpa [#allocation9], 1
    %1957 = vsyncpa [#allocation12], 1
    %1958 = vsyncpa [#allocation15], 1
    %1959 = vsyncpa [#allocation4], 1

</llo_original>
